<compile_context>
chip_gen: v6e
topology: v6e:2x2x1
jax: 0.10.0
libtpu: 0.0.40
codegen_flags: <defaults>
</compile_context>

<pallas_src>
import functools

import jax
import jax.numpy as jnp
from jax import lax
from jax.experimental import pallas as pl
from jax.experimental.pallas import tpu as pltpu


# ----------------------------------------------------------------------------
# kernel
# ----------------------------------------------------------------------------
def _hdc_kernel(x1_ref, x2_ref, wlw_t_ref, blw_ref, wcat_ref, wsum_t_ref,
                b0_ref, pool_ref, w1p_ref, b1p_ref, out_ref, *, tb, md_pad):
    f32 = jnp.float32

    # --- front end, once on the stacked [x1; x2] rows ------------------------
    # combined LDA∘WCCN linear (lda_wccn), then F.normalize (p=2, eps=1e-12).
    x = jnp.concatenate([x1_ref[...], x2_ref[...]], axis=0)        # (2*tb, in)
    y = jnp.dot(x, wlw_t_ref[...], preferred_element_type=f32) + blw_ref[...]
    ss = jnp.sum(y * y, axis=1, keepdims=True)
    y = y * lax.rsqrt(jnp.maximum(ss, 1e-24))                      # == /max(||y||,1e-12)

    a = y[:tb]                                                     # (tb, d)
    b = y[tb:]

    # --- pair-feature contraction with fcs0 -----------------------------------
    # wcat = [wab2 | ws2 | rep]  (d, 3*md_pad), 128-lane aligned segments:
    #   a @ wcat  -> u_a[:, j*d+q]=sum_p a_p W3ab[j,p,q],
    #                v_a[:, j*d+q]=sum_p a_p W3s[j,p,q],
    #                a_rep[:, j*d+q]=a_q
    #   b @ wcat[:, md_pad:] -> v_b, b_rep
    wcat = wcat_ref[...]
    ra = jnp.dot(a, wcat, preferred_element_type=f32)              # (tb, 3*md_pad)
    rb = jnp.dot(b, wcat[:, md_pad:], preferred_element_type=f32)  # (tb, 2*md_pad)
    u_a = ra[:, :md_pad]
    v_a = ra[:, md_pad:2 * md_pad]
    a_rep = ra[:, 2 * md_pad:]
    v_b = rb[:, :md_pad]
    b_rep = rb[:, md_pad:]

    # fused segment-sum ("pool") over q:
    #   h[j] = <vec(a b^T), W3ab[j]> + <vec(a a^T + b b^T), W3s[j]>
    s = u_a * b_rep + v_a * a_rep + v_b * b_rep                    # (tb, md_pad)
    h = jnp.dot(s, pool_ref[...], preferred_element_type=f32)      # (tb, mf_pad)
    h = h + jnp.dot(a + b, wsum_t_ref[...], preferred_element_type=f32)
    h = jnp.maximum(h + b0_ref[...], 0.0)                          # ReLU; Dropout=id

    # --- output linear, lane-padded to 128 (score in lane 0) ------------------
    out_ref[...] = jnp.dot(h, w1p_ref[...], preferred_element_type=f32) + b1p_ref[...]


# ----------------------------------------------------------------------------
# wrapper
# ----------------------------------------------------------------------------
def _round_up(x, m):
    return (x + m - 1) // m * m


def _vmem_capacity_bytes():
    try:
        return int(pltpu.get_tpu_info().vmem_capacity_bytes)
    except Exception:
        return 64 << 20  # conservative (v7x per-TensorCore)


def _pick_tile(batch, in_dim, d, md_pad, mf_pad):
    """Pick the batch tile from VMEM capacity (per-generation sizing)."""
    vmem = _vmem_capacity_bytes()
    # explicit scoped limit: ~100 MiB on 128 MiB chips (v5e/v6e), ~48 MiB on v7x
    limit = min(max(vmem - (16 << 20), 32 << 20), 100 << 20)

    # resident weights (constant index_map -> revisited; budget 2 copies)
    w_bytes = 4 * (in_dim * d + d + 3 * md_pad * d + d * mf_pad + mf_pad
                   + md_pad * mf_pad + mf_pad * 128 + 128)
    budget = max(limit - 2 * w_bytes - (8 << 20), 1 << 20)

    # live f32 temporaries per batch row (+ double-buffered inputs/outputs)
    per_row = 4 * (6 * in_dim + 4 * d + 6 * md_pad + 2 * mf_pad + 3 * 128)
    per_row = int(per_row * 1.5)  # safety margin

    tb = budget // per_row
    tb = max(8, min(int(tb), 1024))
    tb = min(tb, _round_up(max(batch, 1), 8))
    tb = max(8, (tb // 8) * 8)
    return tb, int(limit)


def hdc_forward(x1, x2, kparams, *, d, mid_f):
    assert x1.shape == x2.shape and x1.ndim == 2
    batch, in_dim = x1.shape
    md_pad = _round_up(mid_f * d, 128)
    mf_pad = _round_up(mid_f, 128)
    tb, vmem_limit = _pick_tile(batch, in_dim, d, md_pad, mf_pad)
    b_pad = _round_up(batch, tb)
    pad = b_pad - batch
    if pad:
        x1 = jnp.pad(x1, ((0, pad), (0, 0)))
        x2 = jnp.pad(x2, ((0, pad), (0, 0)))
    x1 = x1.astype(jnp.float32)
    x2 = x2.astype(jnp.float32)
    weights = tuple(kparams)

    kernel = functools.partial(_hdc_kernel, tb=tb, md_pad=md_pad)
    row_spec = pl.BlockSpec((tb, in_dim), lambda i: (i, 0))
    const_specs = [pl.BlockSpec(tuple(w.shape), lambda i: (0, 0)) for w in weights]

    out = pl.pallas_call(
        kernel,
        out_shape=jax.ShapeDtypeStruct((b_pad, 128), jnp.float32),
        grid=(b_pad // tb,),
        in_specs=[row_spec, row_spec] + const_specs,
        out_specs=pl.BlockSpec((tb, 128), lambda i: (i, 0)),
        compiler_params=pltpu.CompilerParams(
            dimension_semantics=("parallel",),
            vmem_limit_bytes=vmem_limit,
        ),
    )(x1, x2, *weights)
    return out[:batch, :1]  # matches `return self.fcs(tmp)` -> (B, 1)


# ----------------------------------------------------------------------------
# parameter construction (synthetic "kaldi" inputs, mirroring LDAWCCNcom.__init__)
# ----------------------------------------------------------------------------
def build_params(key, in_dim, d, mid_f):
    ks = jax.random.split(key, 6)
    kaldi_lda = 0.1 * jax.random.normal(ks[0], (d, in_dim + 1), jnp.float32)
    diag_t = 0.1 * jax.random.normal(ks[1], (d, d), jnp.float32)      # diagonalizing_transform
    plda_mean = 0.1 * jax.random.normal(ks[2], (d,), jnp.float32)

    wlda = kaldi_lda[:, :-1]                      # lda.weight
    blda = kaldi_lda[:, -1]                       # lda.bias (contains_bias=True)
    wwccn = diag_t                                # wccn.weight
    bwccn = -diag_t @ plda_mean                   # wccn.bias
    wlw = wwccn @ wlda                            # lda_wccn.weight
    blw = blda @ wwccn.T + bwccn                  # lda_wccn.bias

    feat = 2 * d * d + d
    w0 = 0.1 * jax.random.normal(ks[3], (mid_f, feat), jnp.float32)   # fcs.fcs0
    b0 = 0.1 * jax.random.normal(ks[4], (mid_f,), jnp.float32)
    w1 = 0.1 * jax.random.normal(ks[5], (1, mid_f), jnp.float32)      # fcs.output
    b1 = 0.1 * jax.random.normal(jax.random.fold_in(key, 99), (1,), jnp.float32)
    return dict(wlw=wlw, blw=blw, w0=w0, b0=b0, w1=w1, b1=b1)


def _pad2(m, rows, cols):
    out = jnp.zeros((rows, cols), jnp.float32)
    return out.at[:m.shape[0], :m.shape[1]].set(m)


def pack_kernel_params(p, d, mid_f):
    md = mid_f * d
    md_pad = _round_up(md, 128)
    mf_pad = _round_up(mid_f, 128)

    w0 = p["w0"]
    w3ab = w0[:, : d * d].reshape(mid_f, d, d)                    # [j, p, q]
    w3s = w0[:, d * d: 2 * d * d].reshape(mid_f, d, d)
    wsum = w0[:, 2 * d * d:]                                      # (mid_f, d)

    wab2 = jnp.transpose(w3ab, (1, 0, 2)).reshape(d, md)          # [p, j*d+q]
    ws2 = jnp.transpose(w3s, (1, 0, 2)).reshape(d, md)
    rep = jnp.tile(jnp.eye(d, dtype=jnp.float32), (1, mid_f))     # lane replication
    # 128-lane aligned segments so in-kernel slices hit vreg-tile boundaries.
    wcat = jnp.concatenate(
        [_pad2(wab2, d, md_pad), _pad2(ws2, d, md_pad), _pad2(rep, d, md_pad)],
        axis=1)                                                   # (d, 3*md_pad)

    pool = jnp.repeat(jnp.eye(mid_f, dtype=jnp.float32), d, axis=0)   # (md, mid_f)
    pool = _pad2(pool, md_pad, mf_pad)                                # (md_pad, mf_pad)

    wsum_t = _pad2(wsum.T, d, mf_pad)                             # (d, mf_pad)
    b0p = _pad2(p["b0"][None, :], 1, mf_pad)                      # (1, mf_pad)
    w1p = _pad2(p["w1"].T, mf_pad, 128)                           # (mf_pad, 128), score lane 0
    b1p = jnp.zeros((1, 128), jnp.float32).at[0, 0].set(p["b1"][0])

    return (p["wlw"].T, p["blw"][None, :], wcat, wsum_t, b0p, pool, w1p, b1p)


# ----------------------------------------------------------------------------
# pure-JAX reference (matches LDAWCCNcom.forward semantics)
# ----------------------------------------------------------------------------
def hdc_reference(x1, x2, p):
    def normalize(x):  # F.normalize(x, p=2, dim=1, eps=1e-12)
        n = jnp.sqrt(jnp.sum(x * x, axis=1, keepdims=True))
        return x / jnp.maximum(n, 1e-12)

    a = normalize(x1 @ p["wlw"].T + p["blw"])
    b = normalize(x2 @ p["wlw"].T + p["blw"])
    B, d = a.shape
    ab = (a[:, :, None] * b[:, None, :]).reshape(B, d * d)
    aabb = (a[:, :, None] * a[:, None, :] + b[:, :, None] * b[:, None, :]).reshape(B, d * d)
    S = jnp.concatenate([ab, aabb, a + b], axis=1)                # 'out_add_vec_cat'
    h = jnp.maximum(S @ p["w0"].T + p["b0"], 0.0)                 # ReLU; Dropout = id
    return h @ p["w1"].T + p["b1"]                                # (B, 1)


if __name__ == "__main__":
    B, in_dim, d, mid_f = 2, 32, 16, 32
    key = jax.random.PRNGKey(0)
    kx1, kx2, kp = jax.random.split(key, 3)
    x1 = jax.random.normal(kx1, (B, in_dim), jnp.float32)
    x2 = jax.random.normal(kx2, (B, in_dim), jnp.float32)

    p = build_params(kp, in_dim, d, mid_f)
    kparams = pack_kernel_params(p, d, mid_f)

    out = hdc_forward(x1, x2, kparams, d=d, mid_f=mid_f)
    out = jax.block_until_ready(out)

    ref = hdc_reference(x1, x2, p)
    assert out.shape == (B, 1), out.shape
    assert jnp.allclose(out, ref, rtol=1e-2, atol=1e-3), (out, ref)
    print("KERNEL_OK")
</pallas_src>

<mosaic_0001>
module attributes {stable_mosaic.version = 11 : i64} {
  func.func @_hdc_kernel(%arg0: i32, %arg1: memref<8x32xf32, #tpu.memory_space<vmem>>, %arg2: memref<8x32xf32, #tpu.memory_space<vmem>>, %arg3: memref<32x16xf32, #tpu.memory_space<vmem>>, %arg4: memref<1x16xf32, #tpu.memory_space<vmem>>, %arg5: memref<16x1536xf32, #tpu.memory_space<vmem>>, %arg6: memref<16x128xf32, #tpu.memory_space<vmem>>, %arg7: memref<1x128xf32, #tpu.memory_space<vmem>>, %arg8: memref<512x128xf32, #tpu.memory_space<vmem>>, %arg9: memref<128x128xf32, #tpu.memory_space<vmem>>, %arg10: memref<1x128xf32, #tpu.memory_space<vmem>>, %arg11: memref<8x128xf32, #tpu.memory_space<vmem>>) attributes {dimension_semantics = [#tpu.dimension_semantics<parallel>], iteration_bounds = array<i64: 1>, scalar_prefetch = 0 : i64, scratch_operands = 0 : i64, tpu.core_type = #tpu.core_type<tc>, window_params = [{transform_indices = @transform_0, window_bounds = array<i64: 8, 32>}, {transform_indices = @transform_1, window_bounds = array<i64: 8, 32>}, {pipeline_mode = #tpu.pipeline_mode<synchronous>, transform_indices = @transform_2, window_bounds = array<i64: 32, 16>}, {pipeline_mode = #tpu.pipeline_mode<synchronous>, transform_indices = @transform_3, window_bounds = array<i64: 1, 16>}, {pipeline_mode = #tpu.pipeline_mode<synchronous>, transform_indices = @transform_4, window_bounds = array<i64: 16, 1536>}, {pipeline_mode = #tpu.pipeline_mode<synchronous>, transform_indices = @transform_5, window_bounds = array<i64: 16, 128>}, {pipeline_mode = #tpu.pipeline_mode<synchronous>, transform_indices = @transform_6, window_bounds = array<i64: 1, 128>}, {pipeline_mode = #tpu.pipeline_mode<synchronous>, transform_indices = @transform_7, window_bounds = array<i64: 512, 128>}, {pipeline_mode = #tpu.pipeline_mode<synchronous>, transform_indices = @transform_8, window_bounds = array<i64: 128, 128>}, {pipeline_mode = #tpu.pipeline_mode<synchronous>, transform_indices = @transform_9, window_bounds = array<i64: 1, 128>}, {transform_indices = @transform_10, window_bounds = array<i64: 8, 128>}]} {
    %c0 = arith.constant 0 : index
    %c0_0 = arith.constant 0 : index
    %0 = vector.load %arg1[%c0, %c0_0] : memref<8x32xf32, #tpu.memory_space<vmem>>, vector<8x32xf32>
    %c0_1 = arith.constant 0 : index
    %c0_2 = arith.constant 0 : index
    %1 = vector.load %arg2[%c0_1, %c0_2] : memref<8x32xf32, #tpu.memory_space<vmem>>, vector<8x32xf32>
    %2 = tpu.concatenate %0, %1 in 0 : vector<8x32xf32>, vector<8x32xf32> -> vector<16x32xf32>
    %c0_3 = arith.constant 0 : index
    %c0_4 = arith.constant 0 : index
    %3 = vector.load %arg3[%c0_3, %c0_4] : memref<32x16xf32, #tpu.memory_space<vmem>>, vector<32x16xf32>
    %cst = arith.constant dense<0.000000e+00> : vector<16x16xf32>
    %4 = tpu.matmul %2, %3, %cst {dimension_numbers = #tpu.dot_dimension_numbers<[1], [0], [0], [1], [0, 0, 1, 1], [], []>} : vector<16x32xf32>, vector<32x16xf32>, vector<16x16xf32> -> vector<16x16xf32>
    %c0_5 = arith.constant 0 : index
    %c0_6 = arith.constant 0 : index
    %5 = vector.load %arg4[%c0_5, %c0_6] : memref<1x16xf32, #tpu.memory_space<vmem>>, vector<1x16xf32>
    %6 = vector.broadcast %5 : vector<1x16xf32> to vector<16x16xf32>
    %7 = arith.addf %4, %6 : vector<16x16xf32>
    %8 = arith.mulf %7, %7 : vector<16x16xf32>
    %cst_7 = arith.constant dense<0.000000e+00> : vector<16xf32>
    %9 = vector.multi_reduction <add>, %8, %cst_7 [1] : vector<16x16xf32> to vector<16xf32>
    %10 = vector.shape_cast %9 : vector<16xf32> to vector<16x1xf32>
    %cst_8 = arith.constant 1.000000e-24 : f32
    %11 = vector.broadcast %cst_8 : f32 to vector<16x1xf32>
    %12 = arith.maximumf %10, %11 : vector<16x1xf32>
    %13 = math.rsqrt %12 : vector<16x1xf32>
    %14 = vector.broadcast %13 : vector<16x1xf32> to vector<16x16xf32>
    %15 = arith.mulf %7, %14 : vector<16x16xf32>
    %16 = vector.extract_strided_slice %15 {offsets = [0, 0], sizes = [8, 16], strides = [1, 1]} : vector<16x16xf32> to vector<8x16xf32>
    %17 = vector.extract_strided_slice %15 {offsets = [8, 0], sizes = [8, 16], strides = [1, 1]} : vector<16x16xf32> to vector<8x16xf32>
    %c0_9 = arith.constant 0 : index
    %c0_10 = arith.constant 0 : index
    %18 = vector.load %arg5[%c0_9, %c0_10] : memref<16x1536xf32, #tpu.memory_space<vmem>>, vector<16x1536xf32>
    %cst_11 = arith.constant dense<0.000000e+00> : vector<8x1536xf32>
    %19 = tpu.matmul %16, %18, %cst_11 {dimension_numbers = #tpu.dot_dimension_numbers<[1], [0], [0], [1], [0, 0, 1, 1], [], []>} : vector<8x16xf32>, vector<16x1536xf32>, vector<8x1536xf32> -> vector<8x1536xf32>
    %20 = vector.extract_strided_slice %18 {offsets = [0, 512], sizes = [16, 1024], strides = [1, 1]} : vector<16x1536xf32> to vector<16x1024xf32>
    %cst_12 = arith.constant dense<0.000000e+00> : vector<8x1024xf32>
    %21 = tpu.matmul %17, %20, %cst_12 {dimension_numbers = #tpu.dot_dimension_numbers<[1], [0], [0], [1], [0, 0, 1, 1], [], []>} : vector<8x16xf32>, vector<16x1024xf32>, vector<8x1024xf32> -> vector<8x1024xf32>
    %22 = vector.extract_strided_slice %19 {offsets = [0, 0], sizes = [8, 512], strides = [1, 1]} : vector<8x1536xf32> to vector<8x512xf32>
    %23 = vector.extract_strided_slice %19 {offsets = [0, 512], sizes = [8, 512], strides = [1, 1]} : vector<8x1536xf32> to vector<8x512xf32>
    %24 = vector.extract_strided_slice %19 {offsets = [0, 1024], sizes = [8, 512], strides = [1, 1]} : vector<8x1536xf32> to vector<8x512xf32>
    %25 = vector.extract_strided_slice %21 {offsets = [0, 0], sizes = [8, 512], strides = [1, 1]} : vector<8x1024xf32> to vector<8x512xf32>
    %26 = vector.extract_strided_slice %21 {offsets = [0, 512], sizes = [8, 512], strides = [1, 1]} : vector<8x1024xf32> to vector<8x512xf32>
    %27 = arith.mulf %22, %26 : vector<8x512xf32>
    %28 = arith.mulf %23, %24 : vector<8x512xf32>
    %29 = arith.addf %27, %28 : vector<8x512xf32>
    %30 = arith.mulf %25, %26 : vector<8x512xf32>
    %31 = arith.addf %29, %30 : vector<8x512xf32>
    %c0_13 = arith.constant 0 : index
    %c0_14 = arith.constant 0 : index
    %32 = vector.load %arg8[%c0_13, %c0_14] : memref<512x128xf32, #tpu.memory_space<vmem>>, vector<512x128xf32>
    %cst_15 = arith.constant dense<0.000000e+00> : vector<8x128xf32>
    %33 = tpu.matmul %31, %32, %cst_15 {dimension_numbers = #tpu.dot_dimension_numbers<[1], [0], [0], [1], [0, 0, 1, 1], [], []>} : vector<8x512xf32>, vector<512x128xf32>, vector<8x128xf32> -> vector<8x128xf32>
    %34 = arith.addf %16, %17 : vector<8x16xf32>
    %c0_16 = arith.constant 0 : index
    %c0_17 = arith.constant 0 : index
    %35 = vector.load %arg6[%c0_16, %c0_17] : memref<16x128xf32, #tpu.memory_space<vmem>>, vector<16x128xf32>
    %cst_18 = arith.constant dense<0.000000e+00> : vector<8x128xf32>
    %36 = tpu.matmul %34, %35, %cst_18 {dimension_numbers = #tpu.dot_dimension_numbers<[1], [0], [0], [1], [0, 0, 1, 1], [], []>} : vector<8x16xf32>, vector<16x128xf32>, vector<8x128xf32> -> vector<8x128xf32>
    %37 = arith.addf %33, %36 : vector<8x128xf32>
    %c0_19 = arith.constant 0 : index
    %c0_20 = arith.constant 0 : index
    %38 = vector.load %arg7[%c0_19, %c0_20] : memref<1x128xf32, #tpu.memory_space<vmem>>, vector<1x128xf32>
    %39 = vector.broadcast %38 : vector<1x128xf32> to vector<8x128xf32>
    %40 = arith.addf %37, %39 : vector<8x128xf32>
    %cst_21 = arith.constant 0.000000e+00 : f32
    %41 = vector.broadcast %cst_21 : f32 to vector<8x128xf32>
    %42 = arith.maximumf %40, %41 : vector<8x128xf32>
    %c0_22 = arith.constant 0 : index
    %c0_23 = arith.constant 0 : index
    %43 = vector.load %arg9[%c0_22, %c0_23] : memref<128x128xf32, #tpu.memory_space<vmem>>, vector<128x128xf32>
    %cst_24 = arith.constant dense<0.000000e+00> : vector<8x128xf32>
    %44 = tpu.matmul %42, %43, %cst_24 {dimension_numbers = #tpu.dot_dimension_numbers<[1], [0], [0], [1], [0, 0, 1, 1], [], []>} : vector<8x128xf32>, vector<128x128xf32>, vector<8x128xf32> -> vector<8x128xf32>
    %c0_25 = arith.constant 0 : index
    %c0_26 = arith.constant 0 : index
    %45 = vector.load %arg10[%c0_25, %c0_26] : memref<1x128xf32, #tpu.memory_space<vmem>>, vector<1x128xf32>
    %46 = vector.broadcast %45 : vector<1x128xf32> to vector<8x128xf32>
    %47 = arith.addf %44, %46 : vector<8x128xf32>
    %c0_27 = arith.constant 0 : index
    %c0_28 = arith.constant 0 : index
    %48 = vector.load %arg11[%c0_27, %c0_28] : memref<8x128xf32, #tpu.memory_space<vmem>>, vector<8x128xf32>
    tpu.vector_store %arg11[%c0_27, %c0_28], %47 {strides = array<i32>} : memref<8x128xf32, #tpu.memory_space<vmem>>, vector<8x128xf32>,
    return
  }
  func.func @transform_0(%arg0: i32) -> (i32, i32) {
    %c0_i32 = arith.constant 0 : i32
    %c0_i32_0 = arith.constant 0 : i32
    return %arg0, %c0_i32 : i32, i32
  }
  func.func @transform_1(%arg0: i32) -> (i32, i32) {
    %c0_i32 = arith.constant 0 : i32
    %c0_i32_0 = arith.constant 0 : i32
    return %arg0, %c0_i32 : i32, i32
  }
  func.func @transform_2(%arg0: i32) -> (i32, i32) {
    %c0_i32 = arith.constant 0 : i32
    %c0_i32_0 = arith.constant 0 : i32
    %c0_i32_1 = arith.constant 0 : i32
    return %c0_i32, %c0_i32_0 : i32, i32
  }
  func.func @transform_3(%arg0: i32) -> (i32, i32) {
    %c0_i32 = arith.constant 0 : i32
    %c0_i32_0 = arith.constant 0 : i32
    %c0_i32_1 = arith.constant 0 : i32
    return %c0_i32, %c0_i32_0 : i32, i32
  }
  func.func @transform_4(%arg0: i32) -> (i32, i32) {
    %c0_i32 = arith.constant 0 : i32
    %c0_i32_0 = arith.constant 0 : i32
    %c0_i32_1 = arith.constant 0 : i32
    return %c0_i32, %c0_i32_0 : i32, i32
  }
  func.func @transform_5(%arg0: i32) -> (i32, i32) {
    %c0_i32 = arith.constant 0 : i32
    %c0_i32_0 = arith.constant 0 : i32
    %c0_i32_1 = arith.constant 0 : i32
    return %c0_i32, %c0_i32_0 : i32, i32
  }
  func.func @transform_6(%arg0: i32) -> (i32, i32) {
    %c0_i32 = arith.constant 0 : i32
    %c0_i32_0 = arith.constant 0 : i32
    %c0_i32_1 = arith.constant 0 : i32
    return %c0_i32, %c0_i32_0 : i32, i32
  }
  func.func @transform_7(%arg0: i32) -> (i32, i32) {
    %c0_i32 = arith.constant 0 : i32
    %c0_i32_0 = arith.constant 0 : i32
    %c0_i32_1 = arith.constant 0 : i32
    return %c0_i32, %c0_i32_0 : i32, i32
  }
  func.func @transform_8(%arg0: i32) -> (i32, i32) {
    %c0_i32 = arith.constant 0 : i32
    %c0_i32_0 = arith.constant 0 : i32
    %c0_i32_1 = arith.constant 0 : i32
    return %c0_i32, %c0_i32_0 : i32, i32
  }
  func.func @transform_9(%arg0: i32) -> (i32, i32) {
    %c0_i32 = arith.constant 0 : i32
    %c0_i32_0 = arith.constant 0 : i32
    %c0_i32_1 = arith.constant 0 : i32
    return %c0_i32, %c0_i32_0 : i32, i32
  }
  func.func @transform_10(%arg0: i32) -> (i32, i32) {
    %c0_i32 = arith.constant 0 : i32
    %c0_i32_0 = arith.constant 0 : i32
    return %arg0, %c0_i32 : i32, i32
  }
}

</mosaic_0001>

<llo_original>
// kernel: tpu_custom_call.1
$region0: #{tpu_custom_call.1}
  #allocation0 [shape = 'u32[]', space=smem, size = 0x4, offset = 0x4, fixed_abs, tag = 'smem constant byte address 0x4 - core index']
  #allocation1 [shape = 'u32[144,128]{1,0:T(1,128)}', space=vmem, size = 0x12000, scoped, tag = 'internal scratch']
  %s0 = inlined_call_operand.vmem [shape: f32[8,32], index: 0, kind: input, shape index: {}]
  %s1 = inlined_call_operand.vmem [shape: f32[8,32], index: 1, kind: input, shape index: {}]
  %s2 = inlined_call_operand.vmem [shape: f32[32,16], index: 2, kind: input, shape index: {}]
  %s3 = inlined_call_operand.vmem [shape: f32[1,16], index: 3, kind: input, shape index: {}]
  %s4 = inlined_call_operand.hbm [shape: f32[16,1536], index: 4, kind: input, shape index: {}]
  %s5 = inlined_call_operand.vmem [shape: f32[16,128], index: 5, kind: input, shape index: {}]
  %s6 = inlined_call_operand.vmem [shape: f32[1,128], index: 6, kind: input, shape index: {}]
  %s7 = inlined_call_operand.hbm [shape: f32[512,128], index: 7, kind: input, shape index: {}]
  %s8 = inlined_call_operand.hbm [shape: f32[128,128], index: 8, kind: input, shape index: {}]
  %s9 = inlined_call_operand.vmem [shape: f32[1,128], index: 9, kind: input, shape index: {}]
  %s10 = inlined_call_operand.hbm [shape: f32[8,128], index: 10, kind: output, shape index: {}]
  %s11 = sld [smem:[#allocation0]]
  $region62: #{tpu_custom_call.1} parent=0
    _
  %s13 = ssub.s32 1, %s11
  %s14 = scalar_select 0, %s13, %s11
  $region1: #{tpu_custom_call.1} parent=0
    #allocation2 [shape = 'u8[98304]{0}', space=vmem, size = 0x18000, scoped, tag = 'input window, operand 4, single buffered']
    #allocation3 [shape = 's32[1]{0}', space=sflag, size = 0x4, scoped, tag = 'scoped memory for tpu_custom_call.1']
    #allocation4 [shape = 's32[1]{0}', space=sflag, size = 0x4, scoped, tag = 'scoped memory for tpu_custom_call.1']
    #allocation5 [shape = 'u8[262144]{0}', space=vmem, size = 0x40000, scoped, tag = 'input window, operand 7, single buffered']
    #allocation6 [shape = 's32[1]{0}', space=sflag, size = 0x4, scoped, tag = 'scoped memory for tpu_custom_call.1']
    #allocation7 [shape = 'u8[65536]{0}', space=vmem, size = 0x10000, scoped, tag = 'input window, operand 8, single buffered']
    #allocation8 [shape = 'u8[4096]{0}', space=vmem, size = 0x1000, scoped, tag = 'output window, operand 0, single buffered']
    %15 = vsyncpa [#allocation3], 0
    %16 = vsyncpa [#allocation6], 0
    %17 = vsyncpa [#allocation4], 0
    // Predicated region
    $region2: #{tpu_custom_call.1} parent=1 // pred_check
      _
    $region3: #{tpu_custom_call.1} parent=1 // pred_check_branch
      %19 = sbr.rel (0) target = $region5
    $region4: #{tpu_custom_call.1} parent=1 // pred_region
      _
    $region5: #{tpu_custom_call.1} parent=1 // pred_fallthru
      _
    // Predicated region
    $region6: #{tpu_custom_call.1} parent=1 // pred_check
      _
    $region7: #{tpu_custom_call.1} parent=1 // pred_check_branch
      %21 = sbr.rel (0) target = $region9
    $region8: #{tpu_custom_call.1} parent=1 // pred_region
      _
    $region9: #{tpu_custom_call.1} parent=1 // pred_fallthru
      _
    // Predicated region
    $region10: #{tpu_custom_call.1} parent=1 // pred_check
      _
    $region11: #{tpu_custom_call.1} parent=1 // pred_check_branch
      %23 = sbr.rel (0) target = $region13
    $region12: #{tpu_custom_call.1} parent=1 // pred_region
      _
    $region13: #{tpu_custom_call.1} parent=1 // pred_fallthru
      _
    // Predicated region
    $region14: #{tpu_custom_call.1} parent=1 // pred_check
      _
    $region15: #{tpu_custom_call.1} parent=1 // pred_check_branch
      %25 = sbr.rel (0) target = $region17
    $region16: #{tpu_custom_call.1} parent=1 // pred_region
      _
    $region17: #{tpu_custom_call.1} parent=1 // pred_fallthru
      _
    // Predicated region
    $region18: #{tpu_custom_call.1} parent=1 // pred_check
      _
    $region19: #{tpu_custom_call.1} parent=1 // pred_check_branch
      %27 = sbr.rel (0) target = $region21
    $region20: #{tpu_custom_call.1} parent=1 // pred_region
      %s29 = ssub.s32 3072, 3072
      %30 = vsyncadd [#allocation3], %s29
      %s31 = sshll.u32 [#allocation2], 4
      %s32 = int_to_ptr.vmem [resolvable:$true] %s31
      %37 = dma.hbm_to_vmem [thread:$0]  %s4, 3072, %s32, [#allocation3], 1536, 1536, 96
    $region21: #{tpu_custom_call.1} parent=1 // pred_fallthru
      _
    // Predicated region
    $region22: #{tpu_custom_call.1} parent=1 // pred_check
      _
    $region23: #{tpu_custom_call.1} parent=1 // pred_check_branch
      %39 = sbr.rel (0) target = $region25
    $region24: #{tpu_custom_call.1} parent=1 // pred_region
      _
    $region25: #{tpu_custom_call.1} parent=1 // pred_fallthru
      _
    // Predicated region
    $region26: #{tpu_custom_call.1} parent=1 // pred_check
      _
    $region27: #{tpu_custom_call.1} parent=1 // pred_check_branch
      %41 = sbr.rel (0) target = $region29
    $region28: #{tpu_custom_call.1} parent=1 // pred_region
      _
    $region29: #{tpu_custom_call.1} parent=1 // pred_fallthru
      _
    // Predicated region
    $region30: #{tpu_custom_call.1} parent=1 // pred_check
      _
    $region31: #{tpu_custom_call.1} parent=1 // pred_check_branch
      %43 = sbr.rel (0) target = $region33
    $region32: #{tpu_custom_call.1} parent=1 // pred_region
      %s45 = ssub.s32 8192, 8192
      %46 = vsyncadd [#allocation6], %s45
      %s47 = sshll.u32 [#allocation5], 4
      %s48 = int_to_ptr.vmem [resolvable:$true] %s47
      %53 = dma.hbm_to_vmem [thread:$0]  %s7, 8192, %s48, [#allocation6], 128, 128, 8
    $region33: #{tpu_custom_call.1} parent=1 // pred_fallthru
      _
    // Predicated region
    $region34: #{tpu_custom_call.1} parent=1 // pred_check
      _
    $region35: #{tpu_custom_call.1} parent=1 // pred_check_branch
      %55 = sbr.rel (0) target = $region37
    $region36: #{tpu_custom_call.1} parent=1 // pred_region
      %s57 = ssub.s32 2048, 2048
      %58 = vsyncadd [#allocation6], %s57
      %s59 = sshll.u32 [#allocation7], 4
      %s60 = int_to_ptr.vmem [resolvable:$true] %s59
      %65 = dma.hbm_to_vmem [thread:$0]  %s8, 2048, %s60, [#allocation6], 128, 128, 8
    $region37: #{tpu_custom_call.1} parent=1 // pred_fallthru
      _
    // Predicated region
    $region38: #{tpu_custom_call.1} parent=1 // pred_check
      _
    $region39: #{tpu_custom_call.1} parent=1 // pred_check_branch
      %67 = sbr.rel (0) target = $region41
    $region40: #{tpu_custom_call.1} parent=1 // pred_region
      _
    $region41: #{tpu_custom_call.1} parent=1 // pred_fallthru
      _
    // Predicated region
    $region42: #{tpu_custom_call.1} parent=1 // pred_check
      _
    $region43: #{tpu_custom_call.1} parent=1 // pred_check_branch
      %69 = sbr.rel (0) target = $region45
    $region44: #{tpu_custom_call.1} parent=1 // pred_region
      %70 = dma.done [#allocation3], 3072
    $region45: #{tpu_custom_call.1} parent=1 // pred_fallthru
      _
    // Predicated region
    $region46: #{tpu_custom_call.1} parent=1 // pred_check
      _
    $region47: #{tpu_custom_call.1} parent=1 // pred_check_branch
      %72 = sbr.rel (0) target = $region49
    $region48: #{tpu_custom_call.1} parent=1 // pred_region
      %73 = dma.done [#allocation6], 8192
    $region49: #{tpu_custom_call.1} parent=1 // pred_fallthru
      _
    // Predicated region
    $region50: #{tpu_custom_call.1} parent=1 // pred_check
      _
    $region51: #{tpu_custom_call.1} parent=1 // pred_check_branch
      %75 = sbr.rel (0) target = $region53
    $region52: #{tpu_custom_call.1} parent=1 // pred_region
      %76 = dma.done [#allocation6], 2048
    $region53: #{tpu_custom_call.1} parent=1 // pred_fallthru
      _
    %v77 = vld [vmem:[%s0] sm:$0xff]
    %v78 = vld [vmem:[%s1] sm:$0xff]
    %v79 = vld [vmem:[%s2] sm:$0xff]
    %v80 = vld [vmem:[%s2 + $0x8] sm:$0xff]
    %v81 = vld [vmem:[%s2 + $0x10] sm:$0xff]
    %v82 = vld [vmem:[%s2 + $0x18] sm:$0xff]
    %v83 = vld [vmem:[%s3] sm:$0x1]
    %v85 = vlaneseq
    %v86 = vshrl.u32 %v85, 7
    %v87 = vsub.s32 0, %v86
    %v88 = vrot.slane %v83, %v87
    %vm90 = vcmask 261120
    %v92 = vsel %vm90, %v77, 0
    %v95 = vsel %vm90, %v78, 0
    %97 = vmatprep.subr.mxu0 0.0
    %98 = vmatpush1.msra.mxu0 0.0
    %99 = vmatprep.subr.mxu0 0.0
    %100 = vmatpush1.msra.mxu0 0.0
    %101 = vmatprep.subr.mxu0 0.0
    %102 = vmatpush1.msra.mxu0 0.0
    %103 = vmatprep.subr.mxu0 0.0
    %104 = vmatpush1.msra.mxu0 0.0
    %105 = vmatprep.subr.mxu0 0.0
    %106 = vmatpush1.msra.mxu0 0.0
    %107 = vmatprep.subr.mxu0 0.0
    %108 = vmatpush1.msra.mxu0 0.0
    %109 = vmatprep.subr.mxu0 0.0
    %110 = vmatpush1.msra.mxu0 0.0
    %111 = vmatprep.subr.mxu0 0.0
    %112 = vmatpush1.msra.mxu0 0.0
    %113 = vmatprep.subr.mxu0 0.0
    %114 = vmatpush1.msra.mxu0 0.0
    %115 = vmatprep.subr.mxu0 0.0
    %116 = vmatpush1.msra.mxu0 0.0
    %117 = vmatprep.subr.mxu0 0.0
    %118 = vmatpush1.msra.mxu0 0.0
    %119 = vmatprep.subr.mxu0 0.0
    %120 = vmatpush1.msra.mxu0 0.0
    %121 = vmatprep.subr.mxu0 0.0
    %122 = vmatpush1.msra.mxu0 %v82
    %123 = vmatprep.subr.mxu0 0.0
    %124 = vmatpush1.msra.mxu0 %v81
    %125 = vmatprep.subr.mxu0 0.0
    %126 = vmatpush1.msra.mxu0 %v80
    %127 = vmatprep.subr.mxu0 0.0
    %128 = vmatpush1.msra.mxu0 %v79
    %129 = vmatprep.subr.mxu0 0.0
    %130 = vmatpush2.msra.mxu0 0.0
    %131 = vmatprep.subr.mxu0 0.0
    %132 = vmatpush2.msra.mxu0 0.0
    %133 = vmatprep.subr.mxu0 0.0
    %134 = vmatpush2.msra.mxu0 0.0
    %135 = vmatprep.subr.mxu0 0.0
    %136 = vmatpush2.msra.mxu0 0.0
    %137 = vmatprep.subr.mxu0 0.0
    %138 = vmatpush2.msra.mxu0 0.0
    %139 = vmatprep.subr.mxu0 0.0
    %140 = vmatpush2.msra.mxu0 0.0
    %141 = vmatprep.subr.mxu0 0.0
    %142 = vmatpush2.msra.mxu0 0.0
    %143 = vmatprep.subr.mxu0 0.0
    %144 = vmatpush2.msra.mxu0 0.0
    %145 = vmatprep.subr.mxu0 0.0
    %146 = vmatpush2.msra.mxu0 0.0
    %147 = vmatprep.subr.mxu0 0.0
    %148 = vmatpush2.msra.mxu0 0.0
    %149 = vmatprep.subr.mxu0 0.0
    %150 = vmatpush2.msra.mxu0 0.0
    %151 = vmatprep.subr.mxu0 0.0
    %152 = vmatpush2.msra.mxu0 0.0
    %153 = vmatprep.subr.mxu0 0.0
    %154 = vmatpush2.msra.mxu0 0.0
    %155 = vmatprep.subr.mxu0 0.0
    %156 = vmatpush2.msra.mxu0 0.0
    %157 = vmatprep.subr.mxu0 0.0
    %158 = vmatpush2.msra.mxu0 0.0
    %159 = vmatprep.subr.mxu0 0.0
    %160 = vmatpush2.msra.mxu0 0.0
    %161 = vmatprep.mubr.f32.mxu0 0.0
    %162 = vmatmul.mubr.f32.gmra.mxu0 %v92
    %v163 = vpop.f32.mrf.mxu0
    %v164 = vadd.f32 %v88, %v163
    %v165 = vpop.f32.mrf.mxu0
    %166 = vmatprep.mubr.f32.mxu0 0.0
    %167 = vmatmul.mubr.f32.gmra.mxu0 %v95
    %v168 = vpop.f32.mrf.mxu0
    %v169 = vadd.f32 %v88, %v168
    %v170 = vpop.f32.mrf.mxu0
    %171 = vdwg.mxu0
    %v172 = vmul.f32 %v164, %v164
    %v173 = vmul.f32 %v169, %v169
    %vm174 = vcmask 130048
    %v175 = vsel %vm174, %v172, 0.0
    %176 = vadd.xlane.f32.xlu0 %v175
    %v177 = vpop.xlane.xlu0 %176
    %v178 = vsel %vm174, %v173, 0.0
    %179 = vadd.xlane.f32.xlu0 %v178
    %v180 = vpop.xlane.xlu0 %179
    %v181 = vmax.f32 %v177, 1e-24
    %v182 = vmax.f32 %v180, 1e-24
    %v183 = vrsqrt.pop %v181
    %v184 = vrsqrt.pop %v182
    %v185 = vmul.f32 %v164, %v183
    %v186 = vmul.f32 %v169, %v184
    %v187 = vld [vmem:[#allocation2] sm:$0xff]
    %v188 = vld [vmem:[#allocation2 + $0x8] sm:$0xff]
    %v189 = vld [vmem:[#allocation2 + $0x10] sm:$0xff]
    %v190 = vld [vmem:[#allocation2 + $0x18] sm:$0xff]
    %v191 = vld [vmem:[#allocation2 + $0x20] sm:$0xff]
    %v192 = vld [vmem:[#allocation2 + $0x28] sm:$0xff]
    %v193 = vld [vmem:[#allocation2 + $0x30] sm:$0xff]
    %v194 = vld [vmem:[#allocation2 + $0x38] sm:$0xff]
    %v195 = vld [vmem:[#allocation2 + $0x40] sm:$0xff]
    %v196 = vld [vmem:[#allocation2 + $0x48] sm:$0xff]
    %v197 = vld [vmem:[#allocation2 + $0x50] sm:$0xff]
    %v198 = vld [vmem:[#allocation2 + $0x58] sm:$0xff]
    %v199 = vld [vmem:[#allocation2 + $0x60] sm:$0xff]
    %v200 = vld [vmem:[#allocation2 + $0x68] sm:$0xff]
    %v201 = vld [vmem:[#allocation2 + $0x70] sm:$0xff]
    %v202 = vld [vmem:[#allocation2 + $0x78] sm:$0xff]
    %v203 = vld [vmem:[#allocation2 + $0x80] sm:$0xff]
    %v204 = vld [vmem:[#allocation2 + $0x88] sm:$0xff]
    %v205 = vld [vmem:[#allocation2 + $0x90] sm:$0xff]
    %v206 = vld [vmem:[#allocation2 + $0x98] sm:$0xff]
    %v207 = vld [vmem:[#allocation2 + $0xa0] sm:$0xff]
    %v208 = vld [vmem:[#allocation2 + $0xa8] sm:$0xff]
    %v209 = vld [vmem:[#allocation2 + $0xb0] sm:$0xff]
    %v210 = vld [vmem:[#allocation2 + $0xb8] sm:$0xff]
    %v212 = vsel %vm174, %v185, 0
    %214 = vmatprep.subr.mxu0 0.0
    %215 = vmatpush1.msra.mxu0 0.0
    %216 = vmatprep.subr.mxu0 0.0
    %217 = vmatpush1.msra.mxu0 0.0
    %218 = vmatprep.subr.mxu0 0.0
    %219 = vmatpush1.msra.mxu0 0.0
    %220 = vmatprep.subr.mxu0 0.0
    %221 = vmatpush1.msra.mxu0 0.0
    %222 = vmatprep.subr.mxu0 0.0
    %223 = vmatpush1.msra.mxu0 0.0
    %224 = vmatprep.subr.mxu0 0.0
    %225 = vmatpush1.msra.mxu0 0.0
    %226 = vmatprep.subr.mxu0 0.0
    %227 = vmatpush1.msra.mxu0 0.0
    %228 = vmatprep.subr.mxu0 0.0
    %229 = vmatpush1.msra.mxu0 0.0
    %230 = vmatprep.subr.mxu0 0.0
    %231 = vmatpush1.msra.mxu0 0.0
    %232 = vmatprep.subr.mxu0 0.0
    %233 = vmatpush1.msra.mxu0 0.0
    %234 = vmatprep.subr.mxu0 0.0
    %235 = vmatpush1.msra.mxu0 0.0
    %236 = vmatprep.subr.mxu0 0.0
    %237 = vmatpush1.msra.mxu0 0.0
    %238 = vmatprep.subr.mxu0 0.0
    %239 = vmatpush1.msra.mxu0 0.0
    %240 = vmatprep.subr.mxu0 0.0
    %241 = vmatpush1.msra.mxu0 0.0
    %242 = vmatprep.subr.mxu0 %v200
    %243 = vmatpush1.msra.mxu0 %v199
    %244 = vmatprep.subr.mxu0 %v188
    %245 = vmatpush1.msra.mxu0 %v187
    %246 = vmatprep.subr.mxu0 0.0
    %247 = vmatpush2.msra.mxu0 0.0
    %248 = vmatprep.subr.mxu0 0.0
    %249 = vmatpush2.msra.mxu0 0.0
    %250 = vmatprep.subr.mxu0 0.0
    %251 = vmatpush2.msra.mxu0 0.0
    %252 = vmatprep.subr.mxu0 0.0
    %253 = vmatpush2.msra.mxu0 0.0
    %254 = vmatprep.subr.mxu0 0.0
    %255 = vmatpush2.msra.mxu0 0.0
    %256 = vmatprep.subr.mxu0 0.0
    %257 = vmatpush2.msra.mxu0 0.0
    %258 = vmatprep.subr.mxu0 0.0
    %259 = vmatpush2.msra.mxu0 0.0
    %260 = vmatprep.subr.mxu0 0.0
    %261 = vmatpush2.msra.mxu0 0.0
    %262 = vmatprep.subr.mxu0 0.0
    %263 = vmatpush2.msra.mxu0 0.0
    %264 = vmatprep.subr.mxu0 0.0
    %265 = vmatpush2.msra.mxu0 0.0
    %266 = vmatprep.subr.mxu0 0.0
    %267 = vmatpush2.msra.mxu0 0.0
    %268 = vmatprep.subr.mxu0 0.0
    %269 = vmatpush2.msra.mxu0 0.0
    %270 = vmatprep.subr.mxu0 0.0
    %271 = vmatpush2.msra.mxu0 0.0
    %272 = vmatprep.subr.mxu0 0.0
    %273 = vmatpush2.msra.mxu0 0.0
    %274 = vmatprep.subr.mxu0 0.0
    %275 = vmatpush2.msra.mxu0 0.0
    %276 = vmatprep.subr.mxu0 0.0
    %277 = vmatpush2.msra.mxu0 0.0
    %278 = vmatprep.mubr.f32.mxu0 0.0
    %279 = vmatmul.mubr.f32.gmra.mxu0 %v212
    %v280 = vpop.f32.mrf.mxu0
    %v281 = vadd.f32 0.0, %v280
    %v282 = vpop.f32.mrf.mxu0
    %v283 = vadd.f32 0.0, %v282
    %284 = vdwg.mxu0
    %285 = vmatprep.subr.mxu0 0.0
    %286 = vmatpush1.msra.mxu0 0.0
    %287 = vmatprep.subr.mxu0 0.0
    %288 = vmatpush1.msra.mxu0 0.0
    %289 = vmatprep.subr.mxu0 0.0
    %290 = vmatpush1.msra.mxu0 0.0
    %291 = vmatprep.subr.mxu0 0.0
    %292 = vmatpush1.msra.mxu0 0.0
    %293 = vmatprep.subr.mxu0 0.0
    %294 = vmatpush1.msra.mxu0 0.0
    %295 = vmatprep.subr.mxu0 0.0
    %296 = vmatpush1.msra.mxu0 0.0
    %297 = vmatprep.subr.mxu0 0.0
    %298 = vmatpush1.msra.mxu0 0.0
    %299 = vmatprep.subr.mxu0 0.0
    %300 = vmatpush1.msra.mxu0 0.0
    %301 = vmatprep.subr.mxu0 0.0
    %302 = vmatpush1.msra.mxu0 0.0
    %303 = vmatprep.subr.mxu0 0.0
    %304 = vmatpush1.msra.mxu0 0.0
    %305 = vmatprep.subr.mxu0 0.0
    %306 = vmatpush1.msra.mxu0 0.0
    %307 = vmatprep.subr.mxu0 0.0
    %308 = vmatpush1.msra.mxu0 0.0
    %309 = vmatprep.subr.mxu0 0.0
    %310 = vmatpush1.msra.mxu0 0.0
    %311 = vmatprep.subr.mxu0 0.0
    %312 = vmatpush1.msra.mxu0 0.0
    %313 = vmatprep.subr.mxu0 %v202
    %314 = vmatpush1.msra.mxu0 %v201
    %315 = vmatprep.subr.mxu0 %v190
    %316 = vmatpush1.msra.mxu0 %v189
    %317 = vmatprep.subr.mxu0 0.0
    %318 = vmatpush2.msra.mxu0 0.0
    %319 = vmatprep.subr.mxu0 0.0
    %320 = vmatpush2.msra.mxu0 0.0
    %321 = vmatprep.subr.mxu0 0.0
    %322 = vmatpush2.msra.mxu0 0.0
    %323 = vmatprep.subr.mxu0 0.0
    %324 = vmatpush2.msra.mxu0 0.0
    %325 = vmatprep.subr.mxu0 0.0
    %326 = vmatpush2.msra.mxu0 0.0
    %327 = vmatprep.subr.mxu0 0.0
    %328 = vmatpush2.msra.mxu0 0.0
    %329 = vmatprep.subr.mxu0 0.0
    %330 = vmatpush2.msra.mxu0 0.0
    %331 = vmatprep.subr.mxu0 0.0
    %332 = vmatpush2.msra.mxu0 0.0
    %333 = vmatprep.subr.mxu0 0.0
    %334 = vmatpush2.msra.mxu0 0.0
    %335 = vmatprep.subr.mxu0 0.0
    %336 = vmatpush2.msra.mxu0 0.0
    %337 = vmatprep.subr.mxu0 0.0
    %338 = vmatpush2.msra.mxu0 0.0
    %339 = vmatprep.subr.mxu0 0.0
    %340 = vmatpush2.msra.mxu0 0.0
    %341 = vmatprep.subr.mxu0 0.0
    %342 = vmatpush2.msra.mxu0 0.0
    %343 = vmatprep.subr.mxu0 0.0
    %344 = vmatpush2.msra.mxu0 0.0
    %345 = vmatprep.subr.mxu0 0.0
    %346 = vmatpush2.msra.mxu0 0.0
    %347 = vmatprep.subr.mxu0 0.0
    %348 = vmatpush2.msra.mxu0 0.0
    %349 = vmatprep.mubr.f32.mxu0 0.0
    %350 = vmatmul.mubr.f32.gmra.mxu0 %v212
    %v351 = vpop.f32.mrf.mxu0
    %v352 = vadd.f32 0.0, %v351
    %v353 = vpop.f32.mrf.mxu0
    %v354 = vadd.f32 0.0, %v353
    %355 = vdwg.mxu0
    %356 = vmatprep.subr.mxu0 0.0
    %357 = vmatpush1.msra.mxu0 0.0
    %358 = vmatprep.subr.mxu0 0.0
    %359 = vmatpush1.msra.mxu0 0.0
    %360 = vmatprep.subr.mxu0 0.0
    %361 = vmatpush1.msra.mxu0 0.0
    %362 = vmatprep.subr.mxu0 0.0
    %363 = vmatpush1.msra.mxu0 0.0
    %364 = vmatprep.subr.mxu0 0.0
    %365 = vmatpush1.msra.mxu0 0.0
    %366 = vmatprep.subr.mxu0 0.0
    %367 = vmatpush1.msra.mxu0 0.0
    %368 = vmatprep.subr.mxu0 0.0
    %369 = vmatpush1.msra.mxu0 0.0
    %370 = vmatprep.subr.mxu0 0.0
    %371 = vmatpush1.msra.mxu0 0.0
    %372 = vmatprep.subr.mxu0 0.0
    %373 = vmatpush1.msra.mxu0 0.0
    %374 = vmatprep.subr.mxu0 0.0
    %375 = vmatpush1.msra.mxu0 0.0
    %376 = vmatprep.subr.mxu0 0.0
    %377 = vmatpush1.msra.mxu0 0.0
    %378 = vmatprep.subr.mxu0 0.0
    %379 = vmatpush1.msra.mxu0 0.0
    %380 = vmatprep.subr.mxu0 0.0
    %381 = vmatpush1.msra.mxu0 0.0
    %382 = vmatprep.subr.mxu0 0.0
    %383 = vmatpush1.msra.mxu0 0.0
    %384 = vmatprep.subr.mxu0 %v204
    %385 = vmatpush1.msra.mxu0 %v203
    %386 = vmatprep.subr.mxu0 %v192
    %387 = vmatpush1.msra.mxu0 %v191
    %388 = vmatprep.subr.mxu0 0.0
    %389 = vmatpush2.msra.mxu0 0.0
    %390 = vmatprep.subr.mxu0 0.0
    %391 = vmatpush2.msra.mxu0 0.0
    %392 = vmatprep.subr.mxu0 0.0
    %393 = vmatpush2.msra.mxu0 0.0
    %394 = vmatprep.subr.mxu0 0.0
    %395 = vmatpush2.msra.mxu0 0.0
    %396 = vmatprep.subr.mxu0 0.0
    %397 = vmatpush2.msra.mxu0 0.0
    %398 = vmatprep.subr.mxu0 0.0
    %399 = vmatpush2.msra.mxu0 0.0
    %400 = vmatprep.subr.mxu0 0.0
    %401 = vmatpush2.msra.mxu0 0.0
    %402 = vmatprep.subr.mxu0 0.0
    %403 = vmatpush2.msra.mxu0 0.0
    %404 = vmatprep.subr.mxu0 0.0
    %405 = vmatpush2.msra.mxu0 0.0
    %406 = vmatprep.subr.mxu0 0.0
    %407 = vmatpush2.msra.mxu0 0.0
    %408 = vmatprep.subr.mxu0 0.0
    %409 = vmatpush2.msra.mxu0 0.0
    %410 = vmatprep.subr.mxu0 0.0
    %411 = vmatpush2.msra.mxu0 0.0
    %412 = vmatprep.subr.mxu0 0.0
    %413 = vmatpush2.msra.mxu0 0.0
    %414 = vmatprep.subr.mxu0 0.0
    %415 = vmatpush2.msra.mxu0 0.0
    %416 = vmatprep.subr.mxu0 0.0
    %417 = vmatpush2.msra.mxu0 0.0
    %418 = vmatprep.subr.mxu0 0.0
    %419 = vmatpush2.msra.mxu0 0.0
    %420 = vmatprep.mubr.f32.mxu0 0.0
    %421 = vmatmul.mubr.f32.gmra.mxu0 %v212
    %v422 = vpop.f32.mrf.mxu0
    %v423 = vadd.f32 0.0, %v422
    %v424 = vpop.f32.mrf.mxu0
    %v425 = vadd.f32 0.0, %v424
    %426 = vdwg.mxu0
    %427 = vmatprep.subr.mxu0 0.0
    %428 = vmatpush1.msra.mxu0 0.0
    %429 = vmatprep.subr.mxu0 0.0
    %430 = vmatpush1.msra.mxu0 0.0
    %431 = vmatprep.subr.mxu0 0.0
    %432 = vmatpush1.msra.mxu0 0.0
    %433 = vmatprep.subr.mxu0 0.0
    %434 = vmatpush1.msra.mxu0 0.0
    %435 = vmatprep.subr.mxu0 0.0
    %436 = vmatpush1.msra.mxu0 0.0
    %437 = vmatprep.subr.mxu0 0.0
    %438 = vmatpush1.msra.mxu0 0.0
    %439 = vmatprep.subr.mxu0 0.0
    %440 = vmatpush1.msra.mxu0 0.0
    %441 = vmatprep.subr.mxu0 0.0
    %442 = vmatpush1.msra.mxu0 0.0
    %443 = vmatprep.subr.mxu0 0.0
    %444 = vmatpush1.msra.mxu0 0.0
    %445 = vmatprep.subr.mxu0 0.0
    %446 = vmatpush1.msra.mxu0 0.0
    %447 = vmatprep.subr.mxu0 0.0
    %448 = vmatpush1.msra.mxu0 0.0
    %449 = vmatprep.subr.mxu0 0.0
    %450 = vmatpush1.msra.mxu0 0.0
    %451 = vmatprep.subr.mxu0 0.0
    %452 = vmatpush1.msra.mxu0 0.0
    %453 = vmatprep.subr.mxu0 0.0
    %454 = vmatpush1.msra.mxu0 0.0
    %455 = vmatprep.subr.mxu0 %v206
    %456 = vmatpush1.msra.mxu0 %v205
    %457 = vmatprep.subr.mxu0 %v194
    %458 = vmatpush1.msra.mxu0 %v193
    %459 = vmatprep.subr.mxu0 0.0
    %460 = vmatpush2.msra.mxu0 0.0
    %461 = vmatprep.subr.mxu0 0.0
    %462 = vmatpush2.msra.mxu0 0.0
    %463 = vmatprep.subr.mxu0 0.0
    %464 = vmatpush2.msra.mxu0 0.0
    %465 = vmatprep.subr.mxu0 0.0
    %466 = vmatpush2.msra.mxu0 0.0
    %467 = vmatprep.subr.mxu0 0.0
    %468 = vmatpush2.msra.mxu0 0.0
    %469 = vmatprep.subr.mxu0 0.0
    %470 = vmatpush2.msra.mxu0 0.0
    %471 = vmatprep.subr.mxu0 0.0
    %472 = vmatpush2.msra.mxu0 0.0
    %473 = vmatprep.subr.mxu0 0.0
    %474 = vmatpush2.msra.mxu0 0.0
    %475 = vmatprep.subr.mxu0 0.0
    %476 = vmatpush2.msra.mxu0 0.0
    %477 = vmatprep.subr.mxu0 0.0
    %478 = vmatpush2.msra.mxu0 0.0
    %479 = vmatprep.subr.mxu0 0.0
    %480 = vmatpush2.msra.mxu0 0.0
    %481 = vmatprep.subr.mxu0 0.0
    %482 = vmatpush2.msra.mxu0 0.0
    %483 = vmatprep.subr.mxu0 0.0
    %484 = vmatpush2.msra.mxu0 0.0
    %485 = vmatprep.subr.mxu0 0.0
    %486 = vmatpush2.msra.mxu0 0.0
    %487 = vmatprep.subr.mxu0 0.0
    %488 = vmatpush2.msra.mxu0 0.0
    %489 = vmatprep.subr.mxu0 0.0
    %490 = vmatpush2.msra.mxu0 0.0
    %491 = vmatprep.mubr.f32.mxu0 0.0
    %492 = vmatmul.mubr.f32.gmra.mxu0 %v212
    %v493 = vpop.f32.mrf.mxu0
    %v494 = vadd.f32 0.0, %v493
    %v495 = vpop.f32.mrf.mxu0
    %v496 = vadd.f32 0.0, %v495
    %497 = vdwg.mxu0
    %498 = vmatprep.subr.mxu0 0.0
    %499 = vmatpush1.msra.mxu0 0.0
    %500 = vmatprep.subr.mxu0 0.0
    %501 = vmatpush1.msra.mxu0 0.0
    %502 = vmatprep.subr.mxu0 0.0
    %503 = vmatpush1.msra.mxu0 0.0
    %504 = vmatprep.subr.mxu0 0.0
    %505 = vmatpush1.msra.mxu0 0.0
    %506 = vmatprep.subr.mxu0 0.0
    %507 = vmatpush1.msra.mxu0 0.0
    %508 = vmatprep.subr.mxu0 0.0
    %509 = vmatpush1.msra.mxu0 0.0
    %510 = vmatprep.subr.mxu0 0.0
    %511 = vmatpush1.msra.mxu0 0.0
    %512 = vmatprep.subr.mxu0 0.0
    %513 = vmatpush1.msra.mxu0 0.0
    %514 = vmatprep.subr.mxu0 0.0
    %515 = vmatpush1.msra.mxu0 0.0
    %516 = vmatprep.subr.mxu0 0.0
    %517 = vmatpush1.msra.mxu0 0.0
    %518 = vmatprep.subr.mxu0 0.0
    %519 = vmatpush1.msra.mxu0 0.0
    %520 = vmatprep.subr.mxu0 0.0
    %521 = vmatpush1.msra.mxu0 0.0
    %522 = vmatprep.subr.mxu0 0.0
    %523 = vmatpush1.msra.mxu0 0.0
    %524 = vmatprep.subr.mxu0 0.0
    %525 = vmatpush1.msra.mxu0 0.0
    %526 = vmatprep.subr.mxu0 %v208
    %527 = vmatpush1.msra.mxu0 %v207
    %528 = vmatprep.subr.mxu0 %v196
    %529 = vmatpush1.msra.mxu0 %v195
    %530 = vmatprep.subr.mxu0 0.0
    %531 = vmatpush2.msra.mxu0 0.0
    %532 = vmatprep.subr.mxu0 0.0
    %533 = vmatpush2.msra.mxu0 0.0
    %534 = vmatprep.subr.mxu0 0.0
    %535 = vmatpush2.msra.mxu0 0.0
    %536 = vmatprep.subr.mxu0 0.0
    %537 = vmatpush2.msra.mxu0 0.0
    %538 = vmatprep.subr.mxu0 0.0
    %539 = vmatpush2.msra.mxu0 0.0
    %540 = vmatprep.subr.mxu0 0.0
    %541 = vmatpush2.msra.mxu0 0.0
    %542 = vmatprep.subr.mxu0 0.0
    %543 = vmatpush2.msra.mxu0 0.0
    %544 = vmatprep.subr.mxu0 0.0
    %545 = vmatpush2.msra.mxu0 0.0
    %546 = vmatprep.subr.mxu0 0.0
    %547 = vmatpush2.msra.mxu0 0.0
    %548 = vmatprep.subr.mxu0 0.0
    %549 = vmatpush2.msra.mxu0 0.0
    %550 = vmatprep.subr.mxu0 0.0
    %551 = vmatpush2.msra.mxu0 0.0
    %552 = vmatprep.subr.mxu0 0.0
    %553 = vmatpush2.msra.mxu0 0.0
    %554 = vmatprep.subr.mxu0 0.0
    %555 = vmatpush2.msra.mxu0 0.0
    %556 = vmatprep.subr.mxu0 0.0
    %557 = vmatpush2.msra.mxu0 0.0
    %558 = vmatprep.subr.mxu0 0.0
    %559 = vmatpush2.msra.mxu0 0.0
    %560 = vmatprep.subr.mxu0 0.0
    %561 = vmatpush2.msra.mxu0 0.0
    %562 = vmatprep.mubr.f32.mxu0 0.0
    %563 = vmatmul.mubr.f32.gmra.mxu0 %v212
    %v564 = vpop.f32.mrf.mxu0
    %v565 = vadd.f32 0.0, %v564
    %v566 = vpop.f32.mrf.mxu0
    %v567 = vadd.f32 0.0, %v566
    %568 = vdwg.mxu0
    %569 = vmatprep.subr.mxu0 0.0
    %570 = vmatpush1.msra.mxu0 0.0
    %571 = vmatprep.subr.mxu0 0.0
    %572 = vmatpush1.msra.mxu0 0.0
    %573 = vmatprep.subr.mxu0 0.0
    %574 = vmatpush1.msra.mxu0 0.0
    %575 = vmatprep.subr.mxu0 0.0
    %576 = vmatpush1.msra.mxu0 0.0
    %577 = vmatprep.subr.mxu0 0.0
    %578 = vmatpush1.msra.mxu0 0.0
    %579 = vmatprep.subr.mxu0 0.0
    %580 = vmatpush1.msra.mxu0 0.0
    %581 = vmatprep.subr.mxu0 0.0
    %582 = vmatpush1.msra.mxu0 0.0
    %583 = vmatprep.subr.mxu0 0.0
    %584 = vmatpush1.msra.mxu0 0.0
    %585 = vmatprep.subr.mxu0 0.0
    %586 = vmatpush1.msra.mxu0 0.0
    %587 = vmatprep.subr.mxu0 0.0
    %588 = vmatpush1.msra.mxu0 0.0
    %589 = vmatprep.subr.mxu0 0.0
    %590 = vmatpush1.msra.mxu0 0.0
    %591 = vmatprep.subr.mxu0 0.0
    %592 = vmatpush1.msra.mxu0 0.0
    %593 = vmatprep.subr.mxu0 0.0
    %594 = vmatpush1.msra.mxu0 0.0
    %595 = vmatprep.subr.mxu0 0.0
    %596 = vmatpush1.msra.mxu0 0.0
    %597 = vmatprep.subr.mxu0 %v210
    %598 = vmatpush1.msra.mxu0 %v209
    %599 = vmatprep.subr.mxu0 %v198
    %600 = vmatpush1.msra.mxu0 %v197
    %601 = vmatprep.subr.mxu0 0.0
    %602 = vmatpush2.msra.mxu0 0.0
    %603 = vmatprep.subr.mxu0 0.0
    %604 = vmatpush2.msra.mxu0 0.0
    %605 = vmatprep.subr.mxu0 0.0
    %606 = vmatpush2.msra.mxu0 0.0
    %607 = vmatprep.subr.mxu0 0.0
    %608 = vmatpush2.msra.mxu0 0.0
    %609 = vmatprep.subr.mxu0 0.0
    %610 = vmatpush2.msra.mxu0 0.0
    %611 = vmatprep.subr.mxu0 0.0
    %612 = vmatpush2.msra.mxu0 0.0
    %613 = vmatprep.subr.mxu0 0.0
    %614 = vmatpush2.msra.mxu0 0.0
    %615 = vmatprep.subr.mxu0 0.0
    %616 = vmatpush2.msra.mxu0 0.0
    %617 = vmatprep.subr.mxu0 0.0
    %618 = vmatpush2.msra.mxu0 0.0
    %619 = vmatprep.subr.mxu0 0.0
    %620 = vmatpush2.msra.mxu0 0.0
    %621 = vmatprep.subr.mxu0 0.0
    %622 = vmatpush2.msra.mxu0 0.0
    %623 = vmatprep.subr.mxu0 0.0
    %624 = vmatpush2.msra.mxu0 0.0
    %625 = vmatprep.subr.mxu0 0.0
    %626 = vmatpush2.msra.mxu0 0.0
    %627 = vmatprep.subr.mxu0 0.0
    %628 = vmatpush2.msra.mxu0 0.0
    %629 = vmatprep.subr.mxu0 0.0
    %630 = vmatpush2.msra.mxu0 0.0
    %631 = vmatprep.subr.mxu0 0.0
    %632 = vmatpush2.msra.mxu0 0.0
    %633 = vmatprep.mubr.f32.mxu0 0.0
    %634 = vmatmul.mubr.f32.gmra.mxu0 %v212
    %v635 = vpop.f32.mrf.mxu0
    %v636 = vadd.f32 0.0, %v635
    %v637 = vpop.f32.mrf.mxu0
    %v638 = vadd.f32 0.0, %v637
    %639 = vdwg.mxu0
    %v641 = vsel %vm174, %v186, 0
    %643 = vmatprep.subr.mxu0 0.0
    %644 = vmatpush1.msra.mxu0 0.0
    %645 = vmatprep.subr.mxu0 0.0
    %646 = vmatpush1.msra.mxu0 0.0
    %647 = vmatprep.subr.mxu0 0.0
    %648 = vmatpush1.msra.mxu0 0.0
    %649 = vmatprep.subr.mxu0 0.0
    %650 = vmatpush1.msra.mxu0 0.0
    %651 = vmatprep.subr.mxu0 0.0
    %652 = vmatpush1.msra.mxu0 0.0
    %653 = vmatprep.subr.mxu0 0.0
    %654 = vmatpush1.msra.mxu0 0.0
    %655 = vmatprep.subr.mxu0 0.0
    %656 = vmatpush1.msra.mxu0 0.0
    %657 = vmatprep.subr.mxu0 0.0
    %658 = vmatpush1.msra.mxu0 0.0
    %659 = vmatprep.subr.mxu0 0.0
    %660 = vmatpush1.msra.mxu0 0.0
    %661 = vmatprep.subr.mxu0 0.0
    %662 = vmatpush1.msra.mxu0 0.0
    %663 = vmatprep.subr.mxu0 0.0
    %664 = vmatpush1.msra.mxu0 0.0
    %665 = vmatprep.subr.mxu0 0.0
    %666 = vmatpush1.msra.mxu0 0.0
    %667 = vmatprep.subr.mxu0 0.0
    %668 = vmatpush1.msra.mxu0 0.0
    %669 = vmatprep.subr.mxu0 0.0
    %670 = vmatpush1.msra.mxu0 0.0
    %671 = vmatprep.subr.mxu0 %v204
    %672 = vmatpush1.msra.mxu0 %v203
    %673 = vmatprep.subr.mxu0 %v192
    %674 = vmatpush1.msra.mxu0 %v191
    %675 = vmatprep.subr.mxu0 0.0
    %676 = vmatpush2.msra.mxu0 0.0
    %677 = vmatprep.subr.mxu0 0.0
    %678 = vmatpush2.msra.mxu0 0.0
    %679 = vmatprep.subr.mxu0 0.0
    %680 = vmatpush2.msra.mxu0 0.0
    %681 = vmatprep.subr.mxu0 0.0
    %682 = vmatpush2.msra.mxu0 0.0
    %683 = vmatprep.subr.mxu0 0.0
    %684 = vmatpush2.msra.mxu0 0.0
    %685 = vmatprep.subr.mxu0 0.0
    %686 = vmatpush2.msra.mxu0 0.0
    %687 = vmatprep.subr.mxu0 0.0
    %688 = vmatpush2.msra.mxu0 0.0
    %689 = vmatprep.subr.mxu0 0.0
    %690 = vmatpush2.msra.mxu0 0.0
    %691 = vmatprep.subr.mxu0 0.0
    %692 = vmatpush2.msra.mxu0 0.0
    %693 = vmatprep.subr.mxu0 0.0
    %694 = vmatpush2.msra.mxu0 0.0
    %695 = vmatprep.subr.mxu0 0.0
    %696 = vmatpush2.msra.mxu0 0.0
    %697 = vmatprep.subr.mxu0 0.0
    %698 = vmatpush2.msra.mxu0 0.0
    %699 = vmatprep.subr.mxu0 0.0
    %700 = vmatpush2.msra.mxu0 0.0
    %701 = vmatprep.subr.mxu0 0.0
    %702 = vmatpush2.msra.mxu0 0.0
    %703 = vmatprep.subr.mxu0 0.0
    %704 = vmatpush2.msra.mxu0 0.0
    %705 = vmatprep.subr.mxu0 0.0
    %706 = vmatpush2.msra.mxu0 0.0
    %707 = vmatprep.mubr.f32.mxu0 0.0
    %708 = vmatmul.mubr.f32.gmra.mxu0 %v641
    %v709 = vpop.f32.mrf.mxu0
    %v710 = vadd.f32 0.0, %v709
    %v711 = vpop.f32.mrf.mxu0
    %v712 = vadd.f32 0.0, %v711
    %713 = vdwg.mxu0
    %714 = vmatprep.subr.mxu0 0.0
    %715 = vmatpush1.msra.mxu0 0.0
    %716 = vmatprep.subr.mxu0 0.0
    %717 = vmatpush1.msra.mxu0 0.0
    %718 = vmatprep.subr.mxu0 0.0
    %719 = vmatpush1.msra.mxu0 0.0
    %720 = vmatprep.subr.mxu0 0.0
    %721 = vmatpush1.msra.mxu0 0.0
    %722 = vmatprep.subr.mxu0 0.0
    %723 = vmatpush1.msra.mxu0 0.0
    %724 = vmatprep.subr.mxu0 0.0
    %725 = vmatpush1.msra.mxu0 0.0
    %726 = vmatprep.subr.mxu0 0.0
    %727 = vmatpush1.msra.mxu0 0.0
    %728 = vmatprep.subr.mxu0 0.0
    %729 = vmatpush1.msra.mxu0 0.0
    %730 = vmatprep.subr.mxu0 0.0
    %731 = vmatpush1.msra.mxu0 0.0
    %732 = vmatprep.subr.mxu0 0.0
    %733 = vmatpush1.msra.mxu0 0.0
    %734 = vmatprep.subr.mxu0 0.0
    %735 = vmatpush1.msra.mxu0 0.0
    %736 = vmatprep.subr.mxu0 0.0
    %737 = vmatpush1.msra.mxu0 0.0
    %738 = vmatprep.subr.mxu0 0.0
    %739 = vmatpush1.msra.mxu0 0.0
    %740 = vmatprep.subr.mxu0 0.0
    %741 = vmatpush1.msra.mxu0 0.0
    %742 = vmatprep.subr.mxu0 %v206
    %743 = vmatpush1.msra.mxu0 %v205
    %744 = vmatprep.subr.mxu0 %v194
    %745 = vmatpush1.msra.mxu0 %v193
    %746 = vmatprep.subr.mxu0 0.0
    %747 = vmatpush2.msra.mxu0 0.0
    %748 = vmatprep.subr.mxu0 0.0
    %749 = vmatpush2.msra.mxu0 0.0
    %750 = vmatprep.subr.mxu0 0.0
    %751 = vmatpush2.msra.mxu0 0.0
    %752 = vmatprep.subr.mxu0 0.0
    %753 = vmatpush2.msra.mxu0 0.0
    %754 = vmatprep.subr.mxu0 0.0
    %755 = vmatpush2.msra.mxu0 0.0
    %756 = vmatprep.subr.mxu0 0.0
    %757 = vmatpush2.msra.mxu0 0.0
    %758 = vmatprep.subr.mxu0 0.0
    %759 = vmatpush2.msra.mxu0 0.0
    %760 = vmatprep.subr.mxu0 0.0
    %761 = vmatpush2.msra.mxu0 0.0
    %762 = vmatprep.subr.mxu0 0.0
    %763 = vmatpush2.msra.mxu0 0.0
    %764 = vmatprep.subr.mxu0 0.0
    %765 = vmatpush2.msra.mxu0 0.0
    %766 = vmatprep.subr.mxu0 0.0
    %767 = vmatpush2.msra.mxu0 0.0
    %768 = vmatprep.subr.mxu0 0.0
    %769 = vmatpush2.msra.mxu0 0.0
    %770 = vmatprep.subr.mxu0 0.0
    %771 = vmatpush2.msra.mxu0 0.0
    %772 = vmatprep.subr.mxu0 0.0
    %773 = vmatpush2.msra.mxu0 0.0
    %774 = vmatprep.subr.mxu0 0.0
    %775 = vmatpush2.msra.mxu0 0.0
    %776 = vmatprep.subr.mxu0 0.0
    %777 = vmatpush2.msra.mxu0 0.0
    %778 = vmatprep.mubr.f32.mxu0 0.0
    %779 = vmatmul.mubr.f32.gmra.mxu0 %v641
    %v780 = vpop.f32.mrf.mxu0
    %v781 = vadd.f32 0.0, %v780
    %v782 = vpop.f32.mrf.mxu0
    %v783 = vadd.f32 0.0, %v782
    %784 = vdwg.mxu0
    %785 = vmatprep.subr.mxu0 0.0
    %786 = vmatpush1.msra.mxu0 0.0
    %787 = vmatprep.subr.mxu0 0.0
    %788 = vmatpush1.msra.mxu0 0.0
    %789 = vmatprep.subr.mxu0 0.0
    %790 = vmatpush1.msra.mxu0 0.0
    %791 = vmatprep.subr.mxu0 0.0
    %792 = vmatpush1.msra.mxu0 0.0
    %793 = vmatprep.subr.mxu0 0.0
    %794 = vmatpush1.msra.mxu0 0.0
    %795 = vmatprep.subr.mxu0 0.0
    %796 = vmatpush1.msra.mxu0 0.0
    %797 = vmatprep.subr.mxu0 0.0
    %798 = vmatpush1.msra.mxu0 0.0
    %799 = vmatprep.subr.mxu0 0.0
    %800 = vmatpush1.msra.mxu0 0.0
    %801 = vmatprep.subr.mxu0 0.0
    %802 = vmatpush1.msra.mxu0 0.0
    %803 = vmatprep.subr.mxu0 0.0
    %804 = vmatpush1.msra.mxu0 0.0
    %805 = vmatprep.subr.mxu0 0.0
    %806 = vmatpush1.msra.mxu0 0.0
    %807 = vmatprep.subr.mxu0 0.0
    %808 = vmatpush1.msra.mxu0 0.0
    %809 = vmatprep.subr.mxu0 0.0
    %810 = vmatpush1.msra.mxu0 0.0
    %811 = vmatprep.subr.mxu0 0.0
    %812 = vmatpush1.msra.mxu0 0.0
    %813 = vmatprep.subr.mxu0 %v208
    %814 = vmatpush1.msra.mxu0 %v207
    %815 = vmatprep.subr.mxu0 %v196
    %816 = vmatpush1.msra.mxu0 %v195
    %817 = vmatprep.subr.mxu0 0.0
    %818 = vmatpush2.msra.mxu0 0.0
    %819 = vmatprep.subr.mxu0 0.0
    %820 = vmatpush2.msra.mxu0 0.0
    %821 = vmatprep.subr.mxu0 0.0
    %822 = vmatpush2.msra.mxu0 0.0
    %823 = vmatprep.subr.mxu0 0.0
    %824 = vmatpush2.msra.mxu0 0.0
    %825 = vmatprep.subr.mxu0 0.0
    %826 = vmatpush2.msra.mxu0 0.0
    %827 = vmatprep.subr.mxu0 0.0
    %828 = vmatpush2.msra.mxu0 0.0
    %829 = vmatprep.subr.mxu0 0.0
    %830 = vmatpush2.msra.mxu0 0.0
    %831 = vmatprep.subr.mxu0 0.0
    %832 = vmatpush2.msra.mxu0 0.0
    %833 = vmatprep.subr.mxu0 0.0
    %834 = vmatpush2.msra.mxu0 0.0
    %835 = vmatprep.subr.mxu0 0.0
    %836 = vmatpush2.msra.mxu0 0.0
    %837 = vmatprep.subr.mxu0 0.0
    %838 = vmatpush2.msra.mxu0 0.0
    %839 = vmatprep.subr.mxu0 0.0
    %840 = vmatpush2.msra.mxu0 0.0
    %841 = vmatprep.subr.mxu0 0.0
    %842 = vmatpush2.msra.mxu0 0.0
    %843 = vmatprep.subr.mxu0 0.0
    %844 = vmatpush2.msra.mxu0 0.0
    %845 = vmatprep.subr.mxu0 0.0
    %846 = vmatpush2.msra.mxu0 0.0
    %847 = vmatprep.subr.mxu0 0.0
    %848 = vmatpush2.msra.mxu0 0.0
    %849 = vmatprep.mubr.f32.mxu0 0.0
    %850 = vmatmul.mubr.f32.gmra.mxu0 %v641
    %v851 = vpop.f32.mrf.mxu0
    %v852 = vadd.f32 0.0, %v851
    %v853 = vpop.f32.mrf.mxu0
    %v854 = vadd.f32 0.0, %v853
    %855 = vdwg.mxu0
    %856 = vmatprep.subr.mxu0 0.0
    %857 = vmatpush1.msra.mxu0 0.0
    %858 = vmatprep.subr.mxu0 0.0
    %859 = vmatpush1.msra.mxu0 0.0
    %860 = vmatprep.subr.mxu0 0.0
    %861 = vmatpush1.msra.mxu0 0.0
    %862 = vmatprep.subr.mxu0 0.0
    %863 = vmatpush1.msra.mxu0 0.0
    %864 = vmatprep.subr.mxu0 0.0
    %865 = vmatpush1.msra.mxu0 0.0
    %866 = vmatprep.subr.mxu0 0.0
    %867 = vmatpush1.msra.mxu0 0.0
    %868 = vmatprep.subr.mxu0 0.0
    %869 = vmatpush1.msra.mxu0 0.0
    %870 = vmatprep.subr.mxu0 0.0
    %871 = vmatpush1.msra.mxu0 0.0
    %872 = vmatprep.subr.mxu0 0.0
    %873 = vmatpush1.msra.mxu0 0.0
    %874 = vmatprep.subr.mxu0 0.0
    %875 = vmatpush1.msra.mxu0 0.0
    %876 = vmatprep.subr.mxu0 0.0
    %877 = vmatpush1.msra.mxu0 0.0
    %878 = vmatprep.subr.mxu0 0.0
    %879 = vmatpush1.msra.mxu0 0.0
    %880 = vmatprep.subr.mxu0 0.0
    %881 = vmatpush1.msra.mxu0 0.0
    %882 = vmatprep.subr.mxu0 0.0
    %883 = vmatpush1.msra.mxu0 0.0
    %884 = vmatprep.subr.mxu0 %v210
    %885 = vmatpush1.msra.mxu0 %v209
    %886 = vmatprep.subr.mxu0 %v198
    %887 = vmatpush1.msra.mxu0 %v197
    %888 = vmatprep.subr.mxu0 0.0
    %889 = vmatpush2.msra.mxu0 0.0
    %890 = vmatprep.subr.mxu0 0.0
    %891 = vmatpush2.msra.mxu0 0.0
    %892 = vmatprep.subr.mxu0 0.0
    %893 = vmatpush2.msra.mxu0 0.0
    %894 = vmatprep.subr.mxu0 0.0
    %895 = vmatpush2.msra.mxu0 0.0
    %896 = vmatprep.subr.mxu0 0.0
    %897 = vmatpush2.msra.mxu0 0.0
    %898 = vmatprep.subr.mxu0 0.0
    %899 = vmatpush2.msra.mxu0 0.0
    %900 = vmatprep.subr.mxu0 0.0
    %901 = vmatpush2.msra.mxu0 0.0
    %902 = vmatprep.subr.mxu0 0.0
    %903 = vmatpush2.msra.mxu0 0.0
    %904 = vmatprep.subr.mxu0 0.0
    %905 = vmatpush2.msra.mxu0 0.0
    %906 = vmatprep.subr.mxu0 0.0
    %907 = vmatpush2.msra.mxu0 0.0
    %908 = vmatprep.subr.mxu0 0.0
    %909 = vmatpush2.msra.mxu0 0.0
    %910 = vmatprep.subr.mxu0 0.0
    %911 = vmatpush2.msra.mxu0 0.0
    %912 = vmatprep.subr.mxu0 0.0
    %913 = vmatpush2.msra.mxu0 0.0
    %914 = vmatprep.subr.mxu0 0.0
    %915 = vmatpush2.msra.mxu0 0.0
    %916 = vmatprep.subr.mxu0 0.0
    %917 = vmatpush2.msra.mxu0 0.0
    %918 = vmatprep.subr.mxu0 0.0
    %919 = vmatpush2.msra.mxu0 0.0
    %920 = vmatprep.mubr.f32.mxu0 0.0
    %921 = vmatmul.mubr.f32.gmra.mxu0 %v641
    %v922 = vpop.f32.mrf.mxu0
    %v923 = vadd.f32 0.0, %v922
    %v924 = vpop.f32.mrf.mxu0
    %v925 = vadd.f32 0.0, %v924
    %926 = vdwg.mxu0
    %v927 = vmul.f32 %v281, %v852
    %v928 = vmul.f32 %v283, %v854
    %v929 = vmul.f32 %v352, %v923
    %v930 = vmul.f32 %v354, %v925
    %v931 = vmul.f32 %v423, %v565
    %v932 = vmul.f32 %v425, %v567
    %v933 = vmul.f32 %v494, %v636
    %v934 = vmul.f32 %v496, %v638
    %v935 = vadd.f32 %v927, %v931
    %v936 = vadd.f32 %v928, %v932
    %v937 = vadd.f32 %v929, %v933
    %v938 = vadd.f32 %v930, %v934
    %v939 = vmul.f32 %v710, %v852
    %v940 = vmul.f32 %v712, %v854
    %v941 = vmul.f32 %v781, %v923
    %v942 = vmul.f32 %v783, %v925
    %v943 = vadd.f32 %v935, %v939
    %v944 = vadd.f32 %v936, %v940
    %v945 = vadd.f32 %v937, %v941
    %v946 = vadd.f32 %v938, %v942
    %v947 = vld [vmem:[#allocation5] sm:$0xff]
    %v948 = vld [vmem:[#allocation5 + $0x8] sm:$0xff]
    %v949 = vld [vmem:[#allocation5 + $0x10] sm:$0xff]
    %v950 = vld [vmem:[#allocation5 + $0x18] sm:$0xff]
    %v951 = vld [vmem:[#allocation5 + $0x20] sm:$0xff]
    %v952 = vld [vmem:[#allocation5 + $0x28] sm:$0xff]
    %v953 = vld [vmem:[#allocation5 + $0x30] sm:$0xff]
    %v954 = vld [vmem:[#allocation5 + $0x38] sm:$0xff]
    %v955 = vld [vmem:[#allocation5 + $0x40] sm:$0xff]
    %v956 = vld [vmem:[#allocation5 + $0x48] sm:$0xff]
    %v957 = vld [vmem:[#allocation5 + $0x50] sm:$0xff]
    %v958 = vld [vmem:[#allocation5 + $0x58] sm:$0xff]
    %v959 = vld [vmem:[#allocation5 + $0x60] sm:$0xff]
    %v960 = vld [vmem:[#allocation5 + $0x68] sm:$0xff]
    %v961 = vld [vmem:[#allocation5 + $0x70] sm:$0xff]
    %v962 = vld [vmem:[#allocation5 + $0x78] sm:$0xff]
    %v963 = vld [vmem:[#allocation5 + $0x80] sm:$0xff]
    %v964 = vld [vmem:[#allocation5 + $0x88] sm:$0xff]
    %v965 = vld [vmem:[#allocation5 + $0x90] sm:$0xff]
    %v966 = vld [vmem:[#allocation5 + $0x98] sm:$0xff]
    %v967 = vld [vmem:[#allocation5 + $0xa0] sm:$0xff]
    %v968 = vld [vmem:[#allocation5 + $0xa8] sm:$0xff]
    %v969 = vld [vmem:[#allocation5 + $0xb0] sm:$0xff]
    %v970 = vld [vmem:[#allocation5 + $0xb8] sm:$0xff]
    %v971 = vld [vmem:[#allocation5 + $0xc0] sm:$0xff]
    %v972 = vld [vmem:[#allocation5 + $0xc8] sm:$0xff]
    %v973 = vld [vmem:[#allocation5 + $0xd0] sm:$0xff]
    %v974 = vld [vmem:[#allocation5 + $0xd8] sm:$0xff]
    %v975 = vld [vmem:[#allocation5 + $0xe0] sm:$0xff]
    %v976 = vld [vmem:[#allocation5 + $0xe8] sm:$0xff]
    %v977 = vld [vmem:[#allocation5 + $0xf0] sm:$0xff]
    %v978 = vld [vmem:[#allocation5 + $0xf8] sm:$0xff]
    %v979 = vld [vmem:[#allocation5 + $0x100] sm:$0xff]
    %v980 = vld [vmem:[#allocation5 + $0x108] sm:$0xff]
    %v981 = vld [vmem:[#allocation5 + $0x110] sm:$0xff]
    %v982 = vld [vmem:[#allocation5 + $0x118] sm:$0xff]
    %v983 = vld [vmem:[#allocation5 + $0x120] sm:$0xff]
    %v984 = vld [vmem:[#allocation5 + $0x128] sm:$0xff]
    %v985 = vld [vmem:[#allocation5 + $0x130] sm:$0xff]
    %v986 = vld [vmem:[#allocation5 + $0x138] sm:$0xff]
    %v987 = vld [vmem:[#allocation5 + $0x140] sm:$0xff]
    %v988 = vld [vmem:[#allocation5 + $0x148] sm:$0xff]
    %v989 = vld [vmem:[#allocation5 + $0x150] sm:$0xff]
    %v990 = vld [vmem:[#allocation5 + $0x158] sm:$0xff]
    %v991 = vld [vmem:[#allocation5 + $0x160] sm:$0xff]
    %v992 = vld [vmem:[#allocation5 + $0x168] sm:$0xff]
    %v993 = vld [vmem:[#allocation5 + $0x170] sm:$0xff]
    %v994 = vld [vmem:[#allocation5 + $0x178] sm:$0xff]
    %v995 = vld [vmem:[#allocation5 + $0x180] sm:$0xff]
    %v996 = vld [vmem:[#allocation5 + $0x188] sm:$0xff]
    %v997 = vld [vmem:[#allocation5 + $0x190] sm:$0xff]
    %v998 = vld [vmem:[#allocation5 + $0x198] sm:$0xff]
    %v999 = vld [vmem:[#allocation5 + $0x1a0] sm:$0xff]
    %v1000 = vld [vmem:[#allocation5 + $0x1a8] sm:$0xff]
    %v1001 = vld [vmem:[#allocation5 + $0x1b0] sm:$0xff]
    %v1002 = vld [vmem:[#allocation5 + $0x1b8] sm:$0xff]
    %v1003 = vld [vmem:[#allocation5 + $0x1c0] sm:$0xff]
    %v1004 = vld [vmem:[#allocation5 + $0x1c8] sm:$0xff]
    %v1005 = vld [vmem:[#allocation5 + $0x1d0] sm:$0xff]
    %v1006 = vld [vmem:[#allocation5 + $0x1d8] sm:$0xff]
    %v1007 = vld [vmem:[#allocation5 + $0x1e0] sm:$0xff]
    %v1008 = vld [vmem:[#allocation5 + $0x1e8] sm:$0xff]
    %v1009 = vld [vmem:[#allocation5 + $0x1f0] sm:$0xff]
    %v1010 = vld [vmem:[#allocation5 + $0x1f8] sm:$0xff]
    %v1011 = vadd.f32 %v185, %v186
    %v1012 = vld [vmem:[%s5] sm:$0xff]
    %v1013 = vld [vmem:[%s5 + $0x8] sm:$0xff]
    %v1015 = vsel %vm174, %v1011, 0
    %1017 = vmatprep.subr.mxu0 0.0
    %1018 = vmatpush1.msra.mxu0 0.0
    %1019 = vmatprep.subr.mxu0 0.0
    %1020 = vmatpush1.msra.mxu0 0.0
    %1021 = vmatprep.subr.mxu0 0.0
    %1022 = vmatpush1.msra.mxu0 0.0
    %1023 = vmatprep.subr.mxu0 0.0
    %1024 = vmatpush1.msra.mxu0 0.0
    %1025 = vmatprep.subr.mxu0 0.0
    %1026 = vmatpush1.msra.mxu0 0.0
    %1027 = vmatprep.subr.mxu0 0.0
    %1028 = vmatpush1.msra.mxu0 0.0
    %1029 = vmatprep.subr.mxu0 0.0
    %1030 = vmatpush1.msra.mxu0 0.0
    %1031 = vmatprep.subr.mxu0 0.0
    %1032 = vmatpush1.msra.mxu0 0.0
    %1033 = vmatprep.subr.mxu0 0.0
    %1034 = vmatpush1.msra.mxu0 0.0
    %1035 = vmatprep.subr.mxu0 0.0
    %1036 = vmatpush1.msra.mxu0 0.0
    %1037 = vmatprep.subr.mxu0 0.0
    %1038 = vmatpush1.msra.mxu0 0.0
    %1039 = vmatprep.subr.mxu0 0.0
    %1040 = vmatpush1.msra.mxu0 0.0
    %1041 = vmatprep.subr.mxu0 0.0
    %1042 = vmatpush1.msra.mxu0 0.0
    %1043 = vmatprep.subr.mxu0 0.0
    %1044 = vmatpush1.msra.mxu0 0.0
    %1045 = vmatprep.subr.mxu0 0.0
    %1046 = vmatpush1.msra.mxu0 %v1013
    %1047 = vmatprep.subr.mxu0 0.0
    %1048 = vmatpush1.msra.mxu0 %v1012
    %1049 = vmatprep.subr.mxu0 0.0
    %1050 = vmatpush2.msra.mxu0 0.0
    %1051 = vmatprep.subr.mxu0 0.0
    %1052 = vmatpush2.msra.mxu0 0.0
    %1053 = vmatprep.subr.mxu0 0.0
    %1054 = vmatpush2.msra.mxu0 0.0
    %1055 = vmatprep.subr.mxu0 0.0
    %1056 = vmatpush2.msra.mxu0 0.0
    %1057 = vmatprep.subr.mxu0 0.0
    %1058 = vmatpush2.msra.mxu0 0.0
    %1059 = vmatprep.subr.mxu0 0.0
    %1060 = vmatpush2.msra.mxu0 0.0
    %1061 = vmatprep.subr.mxu0 0.0
    %1062 = vmatpush2.msra.mxu0 0.0
    %1063 = vmatprep.subr.mxu0 0.0
    %1064 = vmatpush2.msra.mxu0 0.0
    %1065 = vmatprep.subr.mxu0 0.0
    %1066 = vmatpush2.msra.mxu0 0.0
    %1067 = vmatprep.subr.mxu0 0.0
    %1068 = vmatpush2.msra.mxu0 0.0
    %1069 = vmatprep.subr.mxu0 0.0
    %1070 = vmatpush2.msra.mxu0 0.0
    %1071 = vmatprep.subr.mxu0 0.0
    %1072 = vmatpush2.msra.mxu0 0.0
    %1073 = vmatprep.subr.mxu0 0.0
    %1074 = vmatpush2.msra.mxu0 0.0
    %1075 = vmatprep.subr.mxu0 0.0
    %1076 = vmatpush2.msra.mxu0 0.0
    %1077 = vmatprep.subr.mxu0 0.0
    %1078 = vmatpush2.msra.mxu0 0.0
    %1079 = vmatprep.subr.mxu0 0.0
    %1080 = vmatpush2.msra.mxu0 0.0
    %1081 = vmatprep.mubr.f32.mxu0 0.0
    %1082 = vmatmul.mubr.f32.gmra.mxu0 %v1015
    %v1083 = vpop.f32.mrf.mxu0
    %v1084 = vadd.f32 0.0, %v1083
    %v1085 = vpop.f32.mrf.mxu0
    %1086 = vdwg.mxu0
    %1087 = vmatprep.subr.mxu0 0.0
    %1088 = vmatpush1.msra.mxu0 %v962
    %1089 = vmatprep.subr.mxu0 0.0
    %1090 = vmatpush1.msra.mxu0 %v961
    %1091 = vmatprep.subr.mxu0 0.0
    %1092 = vmatpush1.msra.mxu0 %v960
    %1093 = vmatprep.subr.mxu0 0.0
    %1094 = vmatpush1.msra.mxu0 %v959
    %1095 = vmatprep.subr.mxu0 0.0
    %1096 = vmatpush1.msra.mxu0 %v958
    %1097 = vmatprep.subr.mxu0 0.0
    %1098 = vmatpush1.msra.mxu0 %v957
    %1099 = vmatprep.subr.mxu0 0.0
    %1100 = vmatpush1.msra.mxu0 %v956
    %1101 = vmatprep.subr.mxu0 0.0
    %1102 = vmatpush1.msra.mxu0 %v955
    %1103 = vmatprep.subr.mxu0 0.0
    %1104 = vmatpush1.msra.mxu0 %v954
    %1105 = vmatprep.subr.mxu0 0.0
    %1106 = vmatpush1.msra.mxu0 %v953
    %1107 = vmatprep.subr.mxu0 0.0
    %1108 = vmatpush1.msra.mxu0 %v952
    %1109 = vmatprep.subr.mxu0 0.0
    %1110 = vmatpush1.msra.mxu0 %v951
    %1111 = vmatprep.subr.mxu0 0.0
    %1112 = vmatpush1.msra.mxu0 %v950
    %1113 = vmatprep.subr.mxu0 0.0
    %1114 = vmatpush1.msra.mxu0 %v949
    %1115 = vmatprep.subr.mxu0 0.0
    %1116 = vmatpush1.msra.mxu0 %v948
    %1117 = vmatprep.subr.mxu0 0.0
    %1118 = vmatpush1.msra.mxu0 %v947
    %1119 = vmatprep.subr.mxu0 0.0
    %1120 = vmatpush2.msra.mxu0 %v978
    %1121 = vmatprep.subr.mxu0 0.0
    %1122 = vmatpush2.msra.mxu0 %v977
    %1123 = vmatprep.subr.mxu0 0.0
    %1124 = vmatpush2.msra.mxu0 %v976
    %1125 = vmatprep.subr.mxu0 0.0
    %1126 = vmatpush2.msra.mxu0 %v975
    %1127 = vmatprep.subr.mxu0 0.0
    %1128 = vmatpush2.msra.mxu0 %v974
    %1129 = vmatprep.subr.mxu0 0.0
    %1130 = vmatpush2.msra.mxu0 %v973
    %1131 = vmatprep.subr.mxu0 0.0
    %1132 = vmatpush2.msra.mxu0 %v972
    %1133 = vmatprep.subr.mxu0 0.0
    %1134 = vmatpush2.msra.mxu0 %v971
    %1135 = vmatprep.subr.mxu0 0.0
    %1136 = vmatpush2.msra.mxu0 %v970
    %1137 = vmatprep.subr.mxu0 0.0
    %1138 = vmatpush2.msra.mxu0 %v969
    %1139 = vmatprep.subr.mxu0 0.0
    %1140 = vmatpush2.msra.mxu0 %v968
    %1141 = vmatprep.subr.mxu0 0.0
    %1142 = vmatpush2.msra.mxu0 %v967
    %1143 = vmatprep.subr.mxu0 0.0
    %1144 = vmatpush2.msra.mxu0 %v966
    %1145 = vmatprep.subr.mxu0 0.0
    %1146 = vmatpush2.msra.mxu0 %v965
    %1147 = vmatprep.subr.mxu0 0.0
    %1148 = vmatpush2.msra.mxu0 %v964
    %1149 = vmatprep.subr.mxu0 0.0
    %1150 = vmatpush2.msra.mxu0 %v963
    %1151 = vmatprep.mubr.f32.mxu0 %v944
    %1152 = vmatmul.mubr.f32.gmra.mxu0 %v943
    %v1153 = vpop.f32.mrf.mxu0
    %v1154 = vadd.f32 %v1084, %v1153
    %v1155 = vpop.f32.mrf.mxu0
    %1156 = vdwg.mxu0
    %1157 = vmatprep.subr.mxu0 0.0
    %1158 = vmatpush1.msra.mxu0 %v994
    %1159 = vmatprep.subr.mxu0 0.0
    %1160 = vmatpush1.msra.mxu0 %v993
    %1161 = vmatprep.subr.mxu0 0.0
    %1162 = vmatpush1.msra.mxu0 %v992
    %1163 = vmatprep.subr.mxu0 0.0
    %1164 = vmatpush1.msra.mxu0 %v991
    %1165 = vmatprep.subr.mxu0 0.0
    %1166 = vmatpush1.msra.mxu0 %v990
    %1167 = vmatprep.subr.mxu0 0.0
    %1168 = vmatpush1.msra.mxu0 %v989
    %1169 = vmatprep.subr.mxu0 0.0
    %1170 = vmatpush1.msra.mxu0 %v988
    %1171 = vmatprep.subr.mxu0 0.0
    %1172 = vmatpush1.msra.mxu0 %v987
    %1173 = vmatprep.subr.mxu0 0.0
    %1174 = vmatpush1.msra.mxu0 %v986
    %1175 = vmatprep.subr.mxu0 0.0
    %1176 = vmatpush1.msra.mxu0 %v985
    %1177 = vmatprep.subr.mxu0 0.0
    %1178 = vmatpush1.msra.mxu0 %v984
    %1179 = vmatprep.subr.mxu0 0.0
    %1180 = vmatpush1.msra.mxu0 %v983
    %1181 = vmatprep.subr.mxu0 0.0
    %1182 = vmatpush1.msra.mxu0 %v982
    %1183 = vmatprep.subr.mxu0 0.0
    %1184 = vmatpush1.msra.mxu0 %v981
    %1185 = vmatprep.subr.mxu0 0.0
    %1186 = vmatpush1.msra.mxu0 %v980
    %1187 = vmatprep.subr.mxu0 0.0
    %1188 = vmatpush1.msra.mxu0 %v979
    %1189 = vmatprep.subr.mxu0 0.0
    %1190 = vmatpush2.msra.mxu0 %v1010
    %1191 = vmatprep.subr.mxu0 0.0
    %1192 = vmatpush2.msra.mxu0 %v1009
    %1193 = vmatprep.subr.mxu0 0.0
    %1194 = vmatpush2.msra.mxu0 %v1008
    %1195 = vmatprep.subr.mxu0 0.0
    %1196 = vmatpush2.msra.mxu0 %v1007
    %1197 = vmatprep.subr.mxu0 0.0
    %1198 = vmatpush2.msra.mxu0 %v1006
    %1199 = vmatprep.subr.mxu0 0.0
    %1200 = vmatpush2.msra.mxu0 %v1005
    %1201 = vmatprep.subr.mxu0 0.0
    %1202 = vmatpush2.msra.mxu0 %v1004
    %1203 = vmatprep.subr.mxu0 0.0
    %1204 = vmatpush2.msra.mxu0 %v1003
    %1205 = vmatprep.subr.mxu0 0.0
    %1206 = vmatpush2.msra.mxu0 %v1002
    %1207 = vmatprep.subr.mxu0 0.0
    %1208 = vmatpush2.msra.mxu0 %v1001
    %1209 = vmatprep.subr.mxu0 0.0
    %1210 = vmatpush2.msra.mxu0 %v1000
    %1211 = vmatprep.subr.mxu0 0.0
    %1212 = vmatpush2.msra.mxu0 %v999
    %1213 = vmatprep.subr.mxu0 0.0
    %1214 = vmatpush2.msra.mxu0 %v998
    %1215 = vmatprep.subr.mxu0 0.0
    %1216 = vmatpush2.msra.mxu0 %v997
    %1217 = vmatprep.subr.mxu0 0.0
    %1218 = vmatpush2.msra.mxu0 %v996
    %1219 = vmatprep.subr.mxu0 0.0
    %1220 = vmatpush2.msra.mxu0 %v995
    %1221 = vmatprep.mubr.f32.mxu0 %v946
    %1222 = vmatmul.mubr.f32.gmra.mxu0 %v945
    %v1223 = vpop.f32.mrf.mxu0
    %v1224 = vadd.f32 %v1154, %v1223
    %v1225 = vpop.f32.mrf.mxu0
    %1226 = vdwg.mxu0
    %v1227 = vld [vmem:[%s6] sm:$0x1]
    %v1229 = vlaneseq
    %v1230 = vshrl.u32 %v1229, 7
    %v1231 = vsub.s32 0, %v1230
    %v1232 = vrot.slane %v1227, %v1231
    %v1234 = vadd.f32 %v1224, %v1232
    %v1235 = vmax.f32 %v1234, 0.0
    %v1236 = vld [vmem:[#allocation7] sm:$0xff]
    %v1237 = vld [vmem:[#allocation7 + $0x8] sm:$0xff]
    %v1238 = vld [vmem:[#allocation7 + $0x10] sm:$0xff]
    %v1239 = vld [vmem:[#allocation7 + $0x18] sm:$0xff]
    %v1240 = vld [vmem:[#allocation7 + $0x20] sm:$0xff]
    %v1241 = vld [vmem:[#allocation7 + $0x28] sm:$0xff]
    %v1242 = vld [vmem:[#allocation7 + $0x30] sm:$0xff]
    %v1243 = vld [vmem:[#allocation7 + $0x38] sm:$0xff]
    %v1244 = vld [vmem:[#allocation7 + $0x40] sm:$0xff]
    %v1245 = vld [vmem:[#allocation7 + $0x48] sm:$0xff]
    %v1246 = vld [vmem:[#allocation7 + $0x50] sm:$0xff]
    %v1247 = vld [vmem:[#allocation7 + $0x58] sm:$0xff]
    %v1248 = vld [vmem:[#allocation7 + $0x60] sm:$0xff]
    %v1249 = vld [vmem:[#allocation7 + $0x68] sm:$0xff]
    %v1250 = vld [vmem:[#allocation7 + $0x70] sm:$0xff]
    %v1251 = vld [vmem:[#allocation7 + $0x78] sm:$0xff]
    %v1252 = vld [vmem:[%s9] sm:$0x1]
    %v1254 = vlaneseq
    %v1255 = vshrl.u32 %v1254, 7
    %v1256 = vsub.s32 0, %v1255
    %v1257 = vrot.slane %v1252, %v1256
    %1259 = vmatprep.subr.mxu0 0.0
    %1260 = vmatpush1.msra.mxu0 %v1251
    %1261 = vmatprep.subr.mxu0 0.0
    %1262 = vmatpush1.msra.mxu0 %v1250
    %1263 = vmatprep.subr.mxu0 0.0
    %1264 = vmatpush1.msra.mxu0 %v1249
    %1265 = vmatprep.subr.mxu0 0.0
    %1266 = vmatpush1.msra.mxu0 %v1248
    %1267 = vmatprep.subr.mxu0 0.0
    %1268 = vmatpush1.msra.mxu0 %v1247
    %1269 = vmatprep.subr.mxu0 0.0
    %1270 = vmatpush1.msra.mxu0 %v1246
    %1271 = vmatprep.subr.mxu0 0.0
    %1272 = vmatpush1.msra.mxu0 %v1245
    %1273 = vmatprep.subr.mxu0 0.0
    %1274 = vmatpush1.msra.mxu0 %v1244
    %1275 = vmatprep.subr.mxu0 0.0
    %1276 = vmatpush1.msra.mxu0 %v1243
    %1277 = vmatprep.subr.mxu0 0.0
    %1278 = vmatpush1.msra.mxu0 %v1242
    %1279 = vmatprep.subr.mxu0 0.0
    %1280 = vmatpush1.msra.mxu0 %v1241
    %1281 = vmatprep.subr.mxu0 0.0
    %1282 = vmatpush1.msra.mxu0 %v1240
    %1283 = vmatprep.subr.mxu0 0.0
    %1284 = vmatpush1.msra.mxu0 %v1239
    %1285 = vmatprep.subr.mxu0 0.0
    %1286 = vmatpush1.msra.mxu0 %v1238
    %1287 = vmatprep.subr.mxu0 0.0
    %1288 = vmatpush1.msra.mxu0 %v1237
    %1289 = vmatprep.subr.mxu0 0.0
    %1290 = vmatpush1.msra.mxu0 %v1236
    %1291 = vmatprep.subr.mxu0 0.0
    %1292 = vmatpush2.msra.mxu0 0.0
    %1293 = vmatprep.subr.mxu0 0.0
    %1294 = vmatpush2.msra.mxu0 0.0
    %1295 = vmatprep.subr.mxu0 0.0
    %1296 = vmatpush2.msra.mxu0 0.0
    %1297 = vmatprep.subr.mxu0 0.0
    %1298 = vmatpush2.msra.mxu0 0.0
    %1299 = vmatprep.subr.mxu0 0.0
    %1300 = vmatpush2.msra.mxu0 0.0
    %1301 = vmatprep.subr.mxu0 0.0
    %1302 = vmatpush2.msra.mxu0 0.0
    %1303 = vmatprep.subr.mxu0 0.0
    %1304 = vmatpush2.msra.mxu0 0.0
    %1305 = vmatprep.subr.mxu0 0.0
    %1306 = vmatpush2.msra.mxu0 0.0
    %1307 = vmatprep.subr.mxu0 0.0
    %1308 = vmatpush2.msra.mxu0 0.0
    %1309 = vmatprep.subr.mxu0 0.0
    %1310 = vmatpush2.msra.mxu0 0.0
    %1311 = vmatprep.subr.mxu0 0.0
    %1312 = vmatpush2.msra.mxu0 0.0
    %1313 = vmatprep.subr.mxu0 0.0
    %1314 = vmatpush2.msra.mxu0 0.0
    %1315 = vmatprep.subr.mxu0 0.0
    %1316 = vmatpush2.msra.mxu0 0.0
    %1317 = vmatprep.subr.mxu0 0.0
    %1318 = vmatpush2.msra.mxu0 0.0
    %1319 = vmatprep.subr.mxu0 0.0
    %1320 = vmatpush2.msra.mxu0 0.0
    %1321 = vmatprep.subr.mxu0 0.0
    %1322 = vmatpush2.msra.mxu0 0.0
    %1323 = vmatprep.mubr.f32.mxu0 0.0
    %1324 = vmatmul.mubr.f32.gmra.mxu0 %v1235
    %v1325 = vpop.f32.mrf.mxu0
    %v1326 = vadd.f32 %v1257, %v1325
    %v1327 = vpop.f32.mrf.mxu0
    %1328 = vdwg.mxu0
    %1329 = vst [vmem:[#allocation8] sm:$0xff] %v1326
    // Predicated region
    $region54: #{tpu_custom_call.1} parent=1 // pred_check
      _
    $region55: #{tpu_custom_call.1} parent=1 // pred_check_branch
      %1331 = sbr.rel (0) target = $region57
    $region56: #{tpu_custom_call.1} parent=1 // pred_region
      %s1333 = ssub.s32 128, 128
      %1334 = vsyncadd [#allocation4], %s1333
      %s1336 = sshll.u32 [#allocation8], 4
      %s1337 = int_to_ptr.vmem [resolvable:$true] %s1336
      %1339 = dma.vmem_to_hbm [thread:$0]  %s1337, 128, %s10, [#allocation4]
    $region57: #{tpu_custom_call.1} parent=1 // pred_fallthru
      _
    // Predicated region
    $region58: #{tpu_custom_call.1} parent=1 // pred_check
      _
    $region59: #{tpu_custom_call.1} parent=1 // pred_check_branch
      %1341 = sbr.rel (0) target = $region61
    $region60: #{tpu_custom_call.1} parent=1 // pred_region
      %1342 = dma.done [#allocation4], 128
    $region61: #{tpu_custom_call.1} parent=1 // pred_fallthru
      _
    %1343 = vsyncpa [#allocation3], 1
    %1344 = vsyncpa [#allocation6], 1
    %1345 = vsyncpa [#allocation4], 1

</llo_original>
